<compile_context>
chip_gen: v5e
topology: v5e:2x2
jax: 0.10.0
libtpu: 0.0.40
codegen_flags: <defaults>
</compile_context>

<pallas_src>
import math

import jax
import jax.numpy as jnp
from jax import lax
from jax.experimental import pallas as pl
from jax.experimental.pallas import tpu as pltpu

BN_EPS = 1e-5

# Single source of truth for VMEM accounting (the tile picker and
# vmem_limit_bytes previously used different fractions).
VMEM_LIMIT_FRACTION = 0.7    # of physical per-core VMEM, handed to Mosaic
VMEM_FIT_FRACTION = 0.8      # of that limit; headroom for compiler temporaries


# --------------------------- helpers -------------------------------------------

def _round_up(v, m):
    return -(-v // m) * m


def _tpu_vmem_capacity():
    try:
        return int(pltpu.get_tpu_info().vmem_capacity_bytes)
    except Exception:
        return 64 * 1024 * 1024     # conservative (v7x per-TC VMEM)


def _block_vmem_bytes(th, w, cin, p, cout, act_bytes, out_bytes, cmp_bytes):
    """Estimated VMEM for one grid step (pipeline double buffers + transients)."""
    wp = _round_up(w + 2, 8)
    return (
        2 * th * w * cin * act_bytes                        # x row block (double buffered)
        + 2 * th * w * cout * out_bytes                     # output block (double buffered)
        + 2 * (cin * p + 9 * p * p + p * cout) * cmp_bytes  # weights (double buffered)
        + 2 * (4 * p + 2 * cout) * 4                        # folded BN scale/bias
        + (th + 2) * wp * p * cmp_bytes                     # padded stage-1 scratch
        + 2 * w * cin * act_bytes                           # halo-row DMA scratch
        + th * w * 9 * p * cmp_bytes                        # im2col operand (K = 9P)
        + 4 * th * w * max(p, cout) * 4                     # f32 accumulators / transients
    )


def _pick_block_rows(n_imgs, h, w, cin, p, cout, act_bytes, out_bytes, cmp_bytes):
    """Largest row-block divisor of H that fits the VMEM budget (>=2 total steps)."""
    budget = int(VMEM_FIT_FRACTION * VMEM_LIMIT_FRACTION * _tpu_vmem_capacity())
    divisors = sorted((d for d in range(1, h + 1) if h % d == 0), reverse=True)
    fitting = [d for d in divisors
               if _block_vmem_bytes(d, w, cin, p, cout,
                                    act_bytes, out_bytes, cmp_bytes) <= budget]
    if not fitting:
        return 1
    # Bigger tiles win until VMEM limits; just keep >=2 total grid steps so the
    # v7x megacore has something to split.
    for th in fitting:
        if n_imgs * (h // th) >= 2:
            return th
    return fitting[0]


# ------------------------------ fused kernel -----------------------------------

def _make_bottleneck_kernel(TH, H, W, WP, Cin, P, Cout, compute_dtype):
    def kernel(x_ref, xh_ref, w1_ref, w2_ref, w3_ref,
               s1_ref, b1_ref, s2_ref, b2_ref, s3_ref, b3_ref,
               o_ref, pad_ref, halo_ref, sem_ref):
        b = pl.program_id(0)
        r = pl.program_id(1)
        n_rb = pl.num_programs(1)
        row0 = r * TH

        # Kick off the two 1-row halo fetches from HBM first so they overlap the
        # main-row stage-1 matmul (x itself is row-blocked, so its VMEM footprint
        # scales with TH instead of the full image).
        @pl.when(r > 0)
        def _():
            pltpu.make_async_copy(xh_ref.at[b, row0 - 1], halo_ref.at[0],
                                  sem_ref.at[0]).start()

        @pl.when(r < n_rb - 1)
        def _():
            pltpu.make_async_copy(xh_ref.at[b, row0 + TH], halo_ref.at[1],
                                  sem_ref.at[1]).start()

        # Hoisted loads (JAX does not CSE these; load once per grid step).
        w1 = w1_ref[...]                     # (Cin, P)
        w2 = w2_ref[...]                     # (9P, P) im2col weight
        w3 = w3_ref[...]                     # (P, Cout)
        s1 = s1_ref[...]; b1 = b1_ref[...]   # (1, P)   f32
        s2 = s2_ref[...]; b2 = b2_ref[...]   # (1, P)   f32
        s3 = s3_ref[...]; b3 = b3_ref[...]   # (1, Cout) f32

        def conv1_bn_relu(x2d):              # (m, Cin) -> (m, P) compute_dtype
            y = jnp.dot(x2d.astype(compute_dtype), w1,
                        preferred_element_type=jnp.float32)
            return jnp.maximum(y * s1 + b1, 0.0).astype(compute_dtype)

        # Border-only zeroing: the interior [1:TH+1, 1:W+1] and both halo rows
        # are fully overwritten below on every step, so only the left/right
        # zero-pad columns need (re)initialisation here.
        zcol = jnp.zeros((TH + 2, 1, P), compute_dtype)
        pad_ref[:, 0:1, :] = zcol
        pad_ref[:, W + 1:W + 2, :] = zcol
        # TODO(synk): interior rows are still written at sublane offset 1; a
        # zero-column-free layout (interior at offset 0, kw=0 tap via roll/concat)
        # would remove the remaining masked stores.

        # Stage 1 on the TH main rows: one (TH*W, Cin) x (Cin, P) MXU matmul.
        pad_ref[1:TH + 1, 1:W + 1, :] = conv1_bn_relu(
            x_ref[0].reshape(TH * W, Cin)).reshape(TH, W, P)

        # Halo rows: computed from the DMA'd neighbour x rows at interior steps,
        # zeroed at the image top/bottom boundary (re-zeroing is required since
        # the scratch carries stale data from the previous grid step).
        @pl.when(r > 0)
        def _():
            pltpu.make_async_copy(xh_ref.at[b, row0 - 1], halo_ref.at[0],
                                  sem_ref.at[0]).wait()
            pad_ref[0:1, 1:W + 1, :] = conv1_bn_relu(halo_ref[0]).reshape(1, W, P)

        @pl.when(r == 0)
        def _():
            pad_ref[0:1, :, :] = jnp.zeros((1, WP, P), compute_dtype)

        @pl.when(r < n_rb - 1)
        def _():
            pltpu.make_async_copy(xh_ref.at[b, row0 + TH], halo_ref.at[1],
                                  sem_ref.at[1]).wait()
            pad_ref[TH + 1:TH + 2, 1:W + 1, :] = conv1_bn_relu(
                halo_ref[1]).reshape(1, W, P)

        @pl.when(r == n_rb - 1)
        def _():
            pad_ref[TH + 1:TH + 2, :, :] = jnp.zeros((1, WP, P), compute_dtype)

        # Stage 2: 3x3 conv as ONE im2col matmul with K = 9*P (fills the MXU
        # contraction depth instead of 9 K=P pushes + 9 VALU accumulations).
        cols = jnp.concatenate(
            [pad_ref[dh:dh + TH, dw:dw + W, :].reshape(TH * W, P)
             for dh in range(3) for dw in range(3)], axis=-1)           # (TH*W, 9P)
        y2 = jnp.dot(cols, w2, preferred_element_type=jnp.float32)
        y2 = jnp.maximum(y2 * s2 + b2, 0.0).astype(compute_dtype)

        # Stage 3: 1x1 conv + BN + identity residual + ReLU. The residual is
        # re-read from the x block here to keep its f32 live range short.
        y3 = jnp.dot(y2, w3, preferred_element_type=jnp.float32)        # (TH*W, Cout)
        res = x_ref[0].reshape(TH * W, Cout).astype(jnp.float32)        # Cin == Cout
        y3 = jnp.maximum(y3 * s3 + b3 + res, 0.0)
        o_ref[...] = y3.reshape(1, TH, W, Cout).astype(o_ref.dtype)

    return kernel


def bottleneck_forward(x_nchw, p, compute_dtype=jnp.bfloat16, block_rows=None):
    """Fused Pallas Bottleneck forward.

    x_nchw: (N, C, H, W) with C == 4*planes (stride=1, downsample=None).
    compute_dtype=bfloat16 is the production path: activations are shipped and
    returned in bf16 (the kernel is HBM-bandwidth-bound) with f32 accumulation
    and f32 BN/residual epilogues.  float32 keeps everything in f32.
    """
    n, cin, h, w = x_nchw.shape
    planes = p["w1"].shape[1]
    cout = p["w3"].shape[1]
    assert cin == cout, "downsample=None (identity residual) requires inplanes == planes*4"
    # TODO(synk): stride>1 / downsample branch not implemented (module defaults:
    # stride=1, downsample=None).

    bf16 = jnp.dtype(compute_dtype) == jnp.dtype(jnp.bfloat16)
    act_dtype = jnp.bfloat16 if bf16 else x_nchw.dtype

    x = jnp.transpose(x_nchw, (0, 2, 3, 1)).astype(act_dtype)   # NCHW -> NHWC

    act_bytes = jnp.dtype(act_dtype).itemsize
    cmp_bytes = jnp.dtype(compute_dtype).itemsize

    if block_rows is None:
        th = _pick_block_rows(n, h, w, cin, planes, cout,
                              act_bytes, act_bytes, cmp_bytes)
    else:
        if h % block_rows != 0:
            raise ValueError(f"block_rows={block_rows} must divide H={h}")
        th = block_rows
    n_rb = h // th
    wp = _round_up(w + 2, 8)          # sublane-friendly padded-scratch width

    w1 = p["w1"].astype(compute_dtype)          # (Cin, P)
    w2 = p["w2"].astype(compute_dtype)          # (9P, P)
    w3 = p["w3"].astype(compute_dtype)          # (P, Cout)

    kernel = _make_bottleneck_kernel(th, h, w, wp, cin, planes, cout, compute_dtype)

    flops = 2 * n * h * w * (cin * planes + 9 * planes * planes + planes * cout)
    bytes_accessed = int(x.size * act_bytes + n * h * w * cout * act_bytes
                         + (w1.size + w2.size + w3.size) * cmp_bytes
                         + (4 * planes + 2 * cout) * 2 * 4)

    # TODO(synk): single-buffer the grid-invariant weight/BN operands
    # (pipeline_mode=pl.Buffered(1)) to reclaim a few MiB of VMEM on v7x.
    grid_spec = pltpu.PrefetchScalarGridSpec(
        num_scalar_prefetch=0,
        grid=(n, n_rb),
        in_specs=[
            pl.BlockSpec((1, th, w, cin), lambda b, r: (b, r, 0, 0)),   # x row block
            pl.BlockSpec(memory_space=pl.ANY),                          # x in HBM (halo rows)
            pl.BlockSpec((cin, planes), lambda b, r: (0, 0)),           # w1
            pl.BlockSpec((9 * planes, planes), lambda b, r: (0, 0)),    # w2 (im2col)
            pl.BlockSpec((planes, cout), lambda b, r: (0, 0)),          # w3
            pl.BlockSpec((1, planes), lambda b, r: (0, 0)),             # s1
            pl.BlockSpec((1, planes), lambda b, r: (0, 0)),             # b1
            pl.BlockSpec((1, planes), lambda b, r: (0, 0)),             # s2
            pl.BlockSpec((1, planes), lambda b, r: (0, 0)),             # b2
            pl.BlockSpec((1, cout), lambda b, r: (0, 0)),               # s3
            pl.BlockSpec((1, cout), lambda b, r: (0, 0)),               # b3
        ],
        out_specs=pl.BlockSpec((1, th, w, cout), lambda b, r: (b, r, 0, 0)),
        scratch_shapes=[
            pltpu.VMEM((th + 2, wp, planes), compute_dtype),   # padded stage-1 rows
            pltpu.VMEM((2, w, cin), act_dtype),                # halo x rows (DMA dst)
            pltpu.SemaphoreType.DMA((2,)),
        ],
    )

    out = pl.pallas_call(
        kernel,
        out_shape=jax.ShapeDtypeStruct((n, h, w, cout), act_dtype),
        grid_spec=grid_spec,
        compiler_params=pltpu.CompilerParams(
            dimension_semantics=("parallel", "parallel"),
            vmem_limit_bytes=int(VMEM_LIMIT_FRACTION * _tpu_vmem_capacity()),
        ),
        cost_estimate=pl.CostEstimate(flops=flops, transcendentals=0,
                                      bytes_accessed=bytes_accessed),
    )(x, x, w1, w2, w3, p["s1"], p["b1"], p["s2"], p["b2"], p["s3"], p["b3"])

    return jnp.transpose(out, (0, 3, 1, 2))                     # NHWC -> NCHW
    # TODO(synk): stochastic DropPath (drop_prob > 0, training=True) not
    # implemented; the module default drop_path=0.0 makes it an identity.


# --------------------------- parameters ----------------------------------------

def _fold_bn(gamma, beta, mean, var):
    s = gamma / jnp.sqrt(var + BN_EPS)
    b = beta - mean * s
    return s.reshape(1, -1).astype(jnp.float32), b.reshape(1, -1).astype(jnp.float32)


def make_bottleneck_params(key, inplanes, planes, expansion=4):
    # NOTE: for full MXU/VPU lane utilisation `planes` should ideally be a
    # multiple of 128 (stage-1/2 intermediates put channels on the lane axis);
    # smaller values are functionally fine but leave lanes idle.
    ks = jax.random.split(key, 6)
    w1 = jax.random.normal(ks[0], (planes, inplanes, 1, 1), jnp.float32) / math.sqrt(inplanes)
    w2 = jax.random.normal(ks[1], (planes, planes, 3, 3), jnp.float32) / math.sqrt(planes * 9)
    w3 = jax.random.normal(ks[2], (planes * expansion, planes, 1, 1), jnp.float32) / math.sqrt(planes)

    def bn_params(k, c):
        k1, k2, k3, k4 = jax.random.split(k, 4)
        gamma = 1.0 + 0.2 * jax.random.normal(k1, (c,), jnp.float32)
        beta = 0.1 * jax.random.normal(k2, (c,), jnp.float32)
        mean = 0.1 * jax.random.normal(k3, (c,), jnp.float32)
        var = jax.random.uniform(k4, (c,), jnp.float32, 0.5, 1.5)
        return gamma, beta, mean, var

    bn1 = bn_params(ks[3], planes)
    bn2 = bn_params(ks[4], planes)
    bn3 = bn_params(ks[5], planes * expansion)

    s1, b1 = _fold_bn(*bn1)
    s2, b2 = _fold_bn(*bn2)
    s3, b3 = _fold_bn(*bn3)

    return {
        # OIHW weights (for the reference impl)
        "w1_oihw": w1, "w2_oihw": w2, "w3_oihw": w3,
        "bn1": bn1, "bn2": bn2, "bn3": bn3,
        # kernel-layout weights (channels-last matmul forms)
        "w1": w1[:, :, 0, 0].T,                                             # (Cin, P)
        "w2": jnp.transpose(w2, (2, 3, 1, 0)).reshape(9 * planes, planes),  # (9P, P), (kh,kw,cin) order
        "w3": w3[:, :, 0, 0].T,                                             # (P, 4P)
        "s1": s1, "b1": b1, "s2": s2, "b2": b2, "s3": s3, "b3": b3,
    }


# --------------------------- pure-JAX reference ---------------------------------

def bottleneck_reference(x_nchw, p):
    def conv(x, w, stride=1, pad=0):
        return lax.conv_general_dilated(
            x, w, (stride, stride), [(pad, pad), (pad, pad)],
            dimension_numbers=("NCHW", "OIHW", "NCHW"),
            precision=lax.Precision.HIGHEST)

    def bn(x, stats):
        gamma, beta, mean, var = stats
        s = gamma / jnp.sqrt(var + BN_EPS)
        return x * s[None, :, None, None] + (beta - mean * s)[None, :, None, None]

    out = jax.nn.relu(bn(conv(x_nchw, p["w1_oihw"]), p["bn1"]))
    out = jax.nn.relu(bn(conv(out, p["w2_oihw"], 1, 1), p["bn2"]))
    out = bn(conv(out, p["w3_oihw"]), p["bn3"])
    return jax.nn.relu(out + x_nchw)


# --------------------------------- main ------------------------------------------

if __name__ == "__main__":
    planes = 32
    inplanes = planes * 4      # expansion=4, downsample=None -> identity residual;
                               # 128 channels keeps residual/output lane-dense.
    N, H, W = 2, 24, 16

    key = jax.random.PRNGKey(0)
    kx, kp = jax.random.split(key)
    x = jax.random.normal(kx, (N, inplanes, H, W), jnp.float32)   # PyTorch NCHW input
    params = make_bottleneck_params(kp, inplanes, planes)

    ref = jax.block_until_ready(bottleneck_reference(x, params))

    # f32 compute path with a forced small row block (3 blocks per image) so the
    # halo DMAs, interior halo matmuls and boundary re-zeroing are all exercised.
    out_f32 = jax.block_until_ready(
        bottleneck_forward(x, params, compute_dtype=jnp.float32, block_rows=8))
    assert out_f32.shape == (N, inplanes, H, W), out_f32.shape
    err_f32 = float(jnp.max(jnp.abs(out_f32 - ref)))
    assert err_f32 < 1e-3, f"f32 mismatch vs reference: {err_f32}"

    # bf16 activations + weights (f32 accumulation / epilogues) with the default
    # (largest-fitting) row block: the production, HBM-bandwidth-optimised path.
    out_bf16 = jax.block_until_ready(
        bottleneck_forward(x, params, compute_dtype=jnp.bfloat16))
    diff = jnp.abs(out_bf16.astype(jnp.float32) - ref)
    err_bf16_max = float(jnp.max(diff))
    err_bf16_mean = float(jnp.mean(diff))
    assert err_bf16_max < 4e-1, f"bf16 max mismatch vs reference: {err_bf16_max}"
    assert err_bf16_mean < 5e-2, f"bf16 mean mismatch vs reference: {err_bf16_mean}"

    print("KERNEL_OK")
</pallas_src>

<mosaic_0001>
module attributes {stable_mosaic.version = 11 : i64} {
  func.func @kernel(%arg0: i32, %arg1: i32, %arg2: memref<1x8x16x128xf32, #tpu.memory_space<vmem>>, %arg3: memref<2x24x16x128xf32, #tpu.memory_space<any>>, %arg4: memref<128x32xf32, #tpu.memory_space<vmem>>, %arg5: memref<288x32xf32, #tpu.memory_space<vmem>>, %arg6: memref<32x128xf32, #tpu.memory_space<vmem>>, %arg7: memref<1x32xf32, #tpu.memory_space<vmem>>, %arg8: memref<1x32xf32, #tpu.memory_space<vmem>>, %arg9: memref<1x32xf32, #tpu.memory_space<vmem>>, %arg10: memref<1x32xf32, #tpu.memory_space<vmem>>, %arg11: memref<1x128xf32, #tpu.memory_space<vmem>>, %arg12: memref<1x128xf32, #tpu.memory_space<vmem>>, %arg13: memref<1x8x16x128xf32, #tpu.memory_space<vmem>>, %arg14: memref<10x24x32xf32, #tpu.memory_space<vmem>>, %arg15: memref<2x16x128xf32, #tpu.memory_space<vmem>>, %arg16: memref<2x!tpu.dma_semaphore, #tpu.memory_space<semaphore_mem>>) attributes {dimension_semantics = [#tpu.dimension_semantics<parallel>, #tpu.dimension_semantics<parallel>], iteration_bounds = array<i64: 2, 3>, scalar_prefetch = 0 : i64, scratch_operands = 3 : i64, tpu.core_type = #tpu.core_type<tc>, window_params = [{transform_indices = @transform_0, window_bounds = array<i64: 1, 8, 16, 128>}, {}, {pipeline_mode = #tpu.pipeline_mode<synchronous>, transform_indices = @transform_2, window_bounds = array<i64: 128, 32>}, {pipeline_mode = #tpu.pipeline_mode<synchronous>, transform_indices = @transform_3, window_bounds = array<i64: 288, 32>}, {pipeline_mode = #tpu.pipeline_mode<synchronous>, transform_indices = @transform_4, window_bounds = array<i64: 32, 128>}, {pipeline_mode = #tpu.pipeline_mode<synchronous>, transform_indices = @transform_5, window_bounds = array<i64: 1, 32>}, {pipeline_mode = #tpu.pipeline_mode<synchronous>, transform_indices = @transform_6, window_bounds = array<i64: 1, 32>}, {pipeline_mode = #tpu.pipeline_mode<synchronous>, transform_indices = @transform_7, window_bounds = array<i64: 1, 32>}, {pipeline_mode = #tpu.pipeline_mode<synchronous>, transform_indices = @transform_8, window_bounds = array<i64: 1, 32>}, {pipeline_mode = #tpu.pipeline_mode<synchronous>, transform_indices = @transform_9, window_bounds = array<i64: 1, 128>}, {pipeline_mode = #tpu.pipeline_mode<synchronous>, transform_indices = @transform_10, window_bounds = array<i64: 1, 128>}, {transform_indices = @transform_11, window_bounds = array<i64: 1, 8, 16, 128>}]} {
    %c8_i32 = arith.constant 8 : i32
    %0 = arith.muli %arg1, %c8_i32 : i32
    %c0_i32 = arith.constant 0 : i32
    %1 = arith.cmpi sgt, %arg1, %c0_i32 : i32
    %2 = arith.extui %1 : i1 to i32
    %c0_i32_0 = arith.constant 0 : i32
    %3 = arith.cmpi ne, %2, %c0_i32_0 : i32
    scf.if %3 {
      %c1_i32 = arith.constant 1 : i32
      %82 = arith.subi %0, %c1_i32 : i32
      %c0_i32_78 = arith.constant 0 : i32
      %c0_i32_79 = arith.constant 0 : i32
      %c0_i32_80 = arith.constant 0 : i32
      %c0_i32_81 = arith.constant 0 : i32
      %83 = tpu.memref_slice %arg3[%arg0, %82, %c0_i32_80, %c0_i32_81] : memref<2x24x16x128xf32, #tpu.memory_space<any>> -> memref<1x1x16x128xf32, #tpu.memory_space<any>>
      %84 = tpu.memref_squeeze %83 : memref<1x1x16x128xf32, #tpu.memory_space<any>> -> memref<16x128xf32, #tpu.memory_space<any>>
      %c0_i32_82 = arith.constant 0 : i32
      %c0_i32_83 = arith.constant 0 : i32
      %85 = tpu.memref_slice %arg15[%c0_i32_78, %c0_i32_82, %c0_i32_83] : memref<2x16x128xf32, #tpu.memory_space<vmem>> -> memref<1x16x128xf32, #tpu.memory_space<vmem>>
      %86 = tpu.memref_squeeze %85 : memref<1x16x128xf32, #tpu.memory_space<vmem>> -> memref<16x128xf32, #tpu.memory_space<vmem>>
      %87 = tpu.memref_slice %arg16[%c0_i32_79] : memref<2x!tpu.dma_semaphore, #tpu.memory_space<semaphore_mem>> -> memref<1x!tpu.dma_semaphore, #tpu.memory_space<semaphore_mem>>
      %88 = tpu.memref_squeeze %87 : memref<1x!tpu.dma_semaphore, #tpu.memory_space<semaphore_mem>> -> memref<!tpu.dma_semaphore, #tpu.memory_space<semaphore_mem>>
      tpu.enqueue_dma source(%84 : memref<16x128xf32, #tpu.memory_space<any>>) target(%86 : memref<16x128xf32, #tpu.memory_space<vmem>>) target_semaphore(%88 : memref<!tpu.dma_semaphore, #tpu.memory_space<semaphore_mem>>)
    } else {
    }
    %c2_i32 = arith.constant 2 : i32
    %4 = arith.cmpi slt, %arg1, %c2_i32 : i32
    %5 = arith.extui %4 : i1 to i32
    %c0_i32_1 = arith.constant 0 : i32
    %6 = arith.cmpi ne, %5, %c0_i32_1 : i32
    scf.if %6 {
      %c8_i32_78 = arith.constant 8 : i32
      %82 = arith.addi %0, %c8_i32_78 : i32
      %c1_i32 = arith.constant 1 : i32
      %c1_i32_79 = arith.constant 1 : i32
      %c0_i32_80 = arith.constant 0 : i32
      %c0_i32_81 = arith.constant 0 : i32
      %83 = tpu.memref_slice %arg3[%arg0, %82, %c0_i32_80, %c0_i32_81] : memref<2x24x16x128xf32, #tpu.memory_space<any>> -> memref<1x1x16x128xf32, #tpu.memory_space<any>>
      %84 = tpu.memref_squeeze %83 : memref<1x1x16x128xf32, #tpu.memory_space<any>> -> memref<16x128xf32, #tpu.memory_space<any>>
      %c0_i32_82 = arith.constant 0 : i32
      %c0_i32_83 = arith.constant 0 : i32
      %85 = tpu.memref_slice %arg15[%c1_i32, %c0_i32_82, %c0_i32_83] : memref<2x16x128xf32, #tpu.memory_space<vmem>> -> memref<1x16x128xf32, #tpu.memory_space<vmem>>
      %86 = tpu.memref_squeeze %85 : memref<1x16x128xf32, #tpu.memory_space<vmem>> -> memref<16x128xf32, #tpu.memory_space<vmem>>
      %87 = tpu.memref_slice %arg16[%c1_i32_79] : memref<2x!tpu.dma_semaphore, #tpu.memory_space<semaphore_mem>> -> memref<1x!tpu.dma_semaphore, #tpu.memory_space<semaphore_mem>>
      %88 = tpu.memref_squeeze %87 : memref<1x!tpu.dma_semaphore, #tpu.memory_space<semaphore_mem>> -> memref<!tpu.dma_semaphore, #tpu.memory_space<semaphore_mem>>
      tpu.enqueue_dma source(%84 : memref<16x128xf32, #tpu.memory_space<any>>) target(%86 : memref<16x128xf32, #tpu.memory_space<vmem>>) target_semaphore(%88 : memref<!tpu.dma_semaphore, #tpu.memory_space<semaphore_mem>>)
    } else {
    }
    %c0 = arith.constant 0 : index
    %c0_2 = arith.constant 0 : index
    %7 = vector.load %arg4[%c0, %c0_2] : memref<128x32xf32, #tpu.memory_space<vmem>>, vector<128x32xf32>
    %c0_3 = arith.constant 0 : index
    %c0_4 = arith.constant 0 : index
    %8 = vector.load %arg5[%c0_3, %c0_4] : memref<288x32xf32, #tpu.memory_space<vmem>>, vector<288x32xf32>
    %c0_5 = arith.constant 0 : index
    %c0_6 = arith.constant 0 : index
    %9 = vector.load %arg6[%c0_5, %c0_6] : memref<32x128xf32, #tpu.memory_space<vmem>>, vector<32x128xf32>
    %c0_7 = arith.constant 0 : index
    %c0_8 = arith.constant 0 : index
    %10 = vector.load %arg7[%c0_7, %c0_8] : memref<1x32xf32, #tpu.memory_space<vmem>>, vector<1x32xf32>
    %c0_9 = arith.constant 0 : index
    %c0_10 = arith.constant 0 : index
    %11 = vector.load %arg8[%c0_9, %c0_10] : memref<1x32xf32, #tpu.memory_space<vmem>>, vector<1x32xf32>
    %c0_11 = arith.constant 0 : index
    %c0_12 = arith.constant 0 : index
    %12 = vector.load %arg9[%c0_11, %c0_12] : memref<1x32xf32, #tpu.memory_space<vmem>>, vector<1x32xf32>
    %c0_13 = arith.constant 0 : index
    %c0_14 = arith.constant 0 : index
    %13 = vector.load %arg10[%c0_13, %c0_14] : memref<1x32xf32, #tpu.memory_space<vmem>>, vector<1x32xf32>
    %c0_15 = arith.constant 0 : index
    %c0_16 = arith.constant 0 : index
    %14 = vector.load %arg11[%c0_15, %c0_16] : memref<1x128xf32, #tpu.memory_space<vmem>>, vector<1x128xf32>
    %c0_17 = arith.constant 0 : index
    %c0_18 = arith.constant 0 : index
    %15 = vector.load %arg12[%c0_17, %c0_18] : memref<1x128xf32, #tpu.memory_space<vmem>>, vector<1x128xf32>
    %cst = arith.constant 0.000000e+00 : f32
    %16 = vector.broadcast %cst : f32 to vector<10x1x32xf32>
    %c0_19 = arith.constant 0 : index
    %c0_20 = arith.constant 0 : index
    %c0_21 = arith.constant 0 : index
    %17 = vector.load %arg14[%c0_19, %c0_20, %c0_21] : memref<10x24x32xf32, #tpu.memory_space<vmem>>, vector<10x1x32xf32>
    tpu.vector_store %arg14[%c0_19, %c0_20, %c0_21], %16 {strides = array<i32>} : memref<10x24x32xf32, #tpu.memory_space<vmem>>, vector<10x1x32xf32>,
    %c0_22 = arith.constant 0 : index
    %c17 = arith.constant 17 : index
    %c0_23 = arith.constant 0 : index
    %18 = vector.load %arg14[%c0_22, %c17, %c0_23] : memref<10x24x32xf32, #tpu.memory_space<vmem>>, vector<10x1x32xf32>
    tpu.vector_store %arg14[%c0_22, %c17, %c0_23], %16 {strides = array<i32>} : memref<10x24x32xf32, #tpu.memory_space<vmem>>, vector<10x1x32xf32>,
    %c0_24 = arith.constant 0 : index
    %c0_25 = arith.constant 0 : index
    %c0_26 = arith.constant 0 : index
    %c0_27 = arith.constant 0 : index
    %19 = vector.load %arg2[%c0_24, %c0_25, %c0_26, %c0_27] : memref<1x8x16x128xf32, #tpu.memory_space<vmem>>, vector<1x8x16x128xf32>
    %20 = vector.shape_cast %19 : vector<1x8x16x128xf32> to vector<8x16x128xf32>
    %21 = vector.shape_cast %20 : vector<8x16x128xf32> to vector<128x128xf32>
    %cst_28 = arith.constant dense<0.000000e+00> : vector<128x32xf32>
    %22 = tpu.matmul %21, %7, %cst_28 {dimension_numbers = #tpu.dot_dimension_numbers<[1], [0], [0], [1], [0, 0, 1, 1], [], []>} : vector<128x128xf32>, vector<128x32xf32>, vector<128x32xf32> -> vector<128x32xf32>
    %23 = vector.broadcast %10 : vector<1x32xf32> to vector<128x32xf32>
    %24 = arith.mulf %22, %23 : vector<128x32xf32>
    %25 = vector.broadcast %11 : vector<1x32xf32> to vector<128x32xf32>
    %26 = arith.addf %24, %25 : vector<128x32xf32>
    %cst_29 = arith.constant 0.000000e+00 : f32
    %27 = vector.broadcast %cst_29 : f32 to vector<128x32xf32>
    %28 = arith.maximumf %26, %27 : vector<128x32xf32>
    %29 = vector.shape_cast %28 : vector<128x32xf32> to vector<8x16x32xf32>
    %c1 = arith.constant 1 : index
    %c1_30 = arith.constant 1 : index
    %c0_31 = arith.constant 0 : index
    %30 = vector.load %arg14[%c1, %c1_30, %c0_31] : memref<10x24x32xf32, #tpu.memory_space<vmem>>, vector<8x16x32xf32>
    tpu.vector_store %arg14[%c1, %c1_30, %c0_31], %29 {strides = array<i32>} : memref<10x24x32xf32, #tpu.memory_space<vmem>>, vector<8x16x32xf32>,
    %c0_i32_32 = arith.constant 0 : i32
    %31 = arith.cmpi sgt, %arg1, %c0_i32_32 : i32
    %32 = arith.extui %31 : i1 to i32
    %c0_i32_33 = arith.constant 0 : i32
    %33 = arith.cmpi ne, %32, %c0_i32_33 : i32
    scf.if %33 {
      %c1_i32 = arith.constant 1 : i32
      %82 = arith.subi %0, %c1_i32 : i32
      %c0_i32_78 = arith.constant 0 : i32
      %c0_i32_79 = arith.constant 0 : i32
      %c0_i32_80 = arith.constant 0 : i32
      %c0_i32_81 = arith.constant 0 : i32
      %83 = tpu.memref_slice %arg3[%arg0, %82, %c0_i32_80, %c0_i32_81] : memref<2x24x16x128xf32, #tpu.memory_space<any>> -> memref<1x1x16x128xf32, #tpu.memory_space<any>>
      %84 = tpu.memref_squeeze %83 : memref<1x1x16x128xf32, #tpu.memory_space<any>> -> memref<16x128xf32, #tpu.memory_space<any>>
      %c0_i32_82 = arith.constant 0 : i32
      %c0_i32_83 = arith.constant 0 : i32
      %85 = tpu.memref_slice %arg15[%c0_i32_78, %c0_i32_82, %c0_i32_83] : memref<2x16x128xf32, #tpu.memory_space<vmem>> -> memref<1x16x128xf32, #tpu.memory_space<vmem>>
      %86 = tpu.memref_squeeze %85 : memref<1x16x128xf32, #tpu.memory_space<vmem>> -> memref<16x128xf32, #tpu.memory_space<vmem>>
      %87 = tpu.memref_slice %arg16[%c0_i32_79] : memref<2x!tpu.dma_semaphore, #tpu.memory_space<semaphore_mem>> -> memref<1x!tpu.dma_semaphore, #tpu.memory_space<semaphore_mem>>
      %88 = tpu.memref_squeeze %87 : memref<1x!tpu.dma_semaphore, #tpu.memory_space<semaphore_mem>> -> memref<!tpu.dma_semaphore, #tpu.memory_space<semaphore_mem>>
      tpu.wait_dma2 semaphore(%88 : memref<!tpu.dma_semaphore, #tpu.memory_space<semaphore_mem>>) src(%84 : memref<16x128xf32, #tpu.memory_space<any>>) dst(%86 : memref<16x128xf32, #tpu.memory_space<vmem>>)
      %c0_84 = arith.constant 0 : index
      %c0_85 = arith.constant 0 : index
      %c0_86 = arith.constant 0 : index
      %89 = vector.load %arg15[%c0_84, %c0_85, %c0_86] : memref<2x16x128xf32, #tpu.memory_space<vmem>>, vector<1x16x128xf32>
      %90 = vector.shape_cast %89 : vector<1x16x128xf32> to vector<16x128xf32>
      %cst_87 = arith.constant dense<0.000000e+00> : vector<16x32xf32>
      %91 = tpu.matmul %90, %7, %cst_87 {dimension_numbers = #tpu.dot_dimension_numbers<[1], [0], [0], [1], [0, 0, 1, 1], [], []>} : vector<16x128xf32>, vector<128x32xf32>, vector<16x32xf32> -> vector<16x32xf32>
      %92 = vector.broadcast %10 : vector<1x32xf32> to vector<16x32xf32>
      %93 = arith.mulf %91, %92 : vector<16x32xf32>
      %94 = vector.broadcast %11 : vector<1x32xf32> to vector<16x32xf32>
      %95 = arith.addf %93, %94 : vector<16x32xf32>
      %cst_88 = arith.constant 0.000000e+00 : f32
      %96 = vector.broadcast %cst_88 : f32 to vector<16x32xf32>
      %97 = arith.maximumf %95, %96 : vector<16x32xf32>
      %98 = vector.shape_cast %97 : vector<16x32xf32> to vector<1x16x32xf32>
      %c0_89 = arith.constant 0 : index
      %c1_90 = arith.constant 1 : index
      %c0_91 = arith.constant 0 : index
      %99 = vector.load %arg14[%c0_89, %c1_90, %c0_91] : memref<10x24x32xf32, #tpu.memory_space<vmem>>, vector<1x16x32xf32>
      tpu.vector_store %arg14[%c0_89, %c1_90, %c0_91], %98 {strides = array<i32>} : memref<10x24x32xf32, #tpu.memory_space<vmem>>, vector<1x16x32xf32>,
    } else {
    }
    %c0_i32_34 = arith.constant 0 : i32
    %34 = arith.cmpi eq, %arg1, %c0_i32_34 : i32
    %35 = arith.extui %34 : i1 to i32
    %c0_i32_35 = arith.constant 0 : i32
    %36 = arith.cmpi ne, %35, %c0_i32_35 : i32
    scf.if %36 {
      %cst_78 = arith.constant 0.000000e+00 : f32
      %82 = vector.broadcast %cst_78 : f32 to vector<1x24x32xf32>
      %c0_79 = arith.constant 0 : index
      %c0_80 = arith.constant 0 : index
      %c0_81 = arith.constant 0 : index
      %83 = vector.load %arg14[%c0_79, %c0_80, %c0_81] : memref<10x24x32xf32, #tpu.memory_space<vmem>>, vector<1x24x32xf32>
      tpu.vector_store %arg14[%c0_79, %c0_80, %c0_81], %82 {strides = array<i32>} : memref<10x24x32xf32, #tpu.memory_space<vmem>>, vector<1x24x32xf32>,
    } else {
    }
    %c2_i32_36 = arith.constant 2 : i32
    %37 = arith.cmpi slt, %arg1, %c2_i32_36 : i32
    %38 = arith.extui %37 : i1 to i32
    %c0_i32_37 = arith.constant 0 : i32
    %39 = arith.cmpi ne, %38, %c0_i32_37 : i32
    scf.if %39 {
      %c8_i32_78 = arith.constant 8 : i32
      %82 = arith.addi %0, %c8_i32_78 : i32
      %c1_i32 = arith.constant 1 : i32
      %c1_i32_79 = arith.constant 1 : i32
      %c0_i32_80 = arith.constant 0 : i32
      %c0_i32_81 = arith.constant 0 : i32
      %83 = tpu.memref_slice %arg3[%arg0, %82, %c0_i32_80, %c0_i32_81] : memref<2x24x16x128xf32, #tpu.memory_space<any>> -> memref<1x1x16x128xf32, #tpu.memory_space<any>>
      %84 = tpu.memref_squeeze %83 : memref<1x1x16x128xf32, #tpu.memory_space<any>> -> memref<16x128xf32, #tpu.memory_space<any>>
      %c0_i32_82 = arith.constant 0 : i32
      %c0_i32_83 = arith.constant 0 : i32
      %85 = tpu.memref_slice %arg15[%c1_i32, %c0_i32_82, %c0_i32_83] : memref<2x16x128xf32, #tpu.memory_space<vmem>> -> memref<1x16x128xf32, #tpu.memory_space<vmem>>
      %86 = tpu.memref_squeeze %85 : memref<1x16x128xf32, #tpu.memory_space<vmem>> -> memref<16x128xf32, #tpu.memory_space<vmem>>
      %87 = tpu.memref_slice %arg16[%c1_i32_79] : memref<2x!tpu.dma_semaphore, #tpu.memory_space<semaphore_mem>> -> memref<1x!tpu.dma_semaphore, #tpu.memory_space<semaphore_mem>>
      %88 = tpu.memref_squeeze %87 : memref<1x!tpu.dma_semaphore, #tpu.memory_space<semaphore_mem>> -> memref<!tpu.dma_semaphore, #tpu.memory_space<semaphore_mem>>
      tpu.wait_dma2 semaphore(%88 : memref<!tpu.dma_semaphore, #tpu.memory_space<semaphore_mem>>) src(%84 : memref<16x128xf32, #tpu.memory_space<any>>) dst(%86 : memref<16x128xf32, #tpu.memory_space<vmem>>)
      %c1_84 = arith.constant 1 : index
      %c0_85 = arith.constant 0 : index
      %c0_86 = arith.constant 0 : index
      %89 = vector.load %arg15[%c1_84, %c0_85, %c0_86] : memref<2x16x128xf32, #tpu.memory_space<vmem>>, vector<1x16x128xf32>
      %90 = vector.shape_cast %89 : vector<1x16x128xf32> to vector<16x128xf32>
      %cst_87 = arith.constant dense<0.000000e+00> : vector<16x32xf32>
      %91 = tpu.matmul %90, %7, %cst_87 {dimension_numbers = #tpu.dot_dimension_numbers<[1], [0], [0], [1], [0, 0, 1, 1], [], []>} : vector<16x128xf32>, vector<128x32xf32>, vector<16x32xf32> -> vector<16x32xf32>
      %92 = vector.broadcast %10 : vector<1x32xf32> to vector<16x32xf32>
      %93 = arith.mulf %91, %92 : vector<16x32xf32>
      %94 = vector.broadcast %11 : vector<1x32xf32> to vector<16x32xf32>
      %95 = arith.addf %93, %94 : vector<16x32xf32>
      %cst_88 = arith.constant 0.000000e+00 : f32
      %96 = vector.broadcast %cst_88 : f32 to vector<16x32xf32>
      %97 = arith.maximumf %95, %96 : vector<16x32xf32>
      %98 = vector.shape_cast %97 : vector<16x32xf32> to vector<1x16x32xf32>
      %c9 = arith.constant 9 : index
      %c1_89 = arith.constant 1 : index
      %c0_90 = arith.constant 0 : index
      %99 = vector.load %arg14[%c9, %c1_89, %c0_90] : memref<10x24x32xf32, #tpu.memory_space<vmem>>, vector<1x16x32xf32>
      tpu.vector_store %arg14[%c9, %c1_89, %c0_90], %98 {strides = array<i32>} : memref<10x24x32xf32, #tpu.memory_space<vmem>>, vector<1x16x32xf32>,
    } else {
    }
    %c2_i32_38 = arith.constant 2 : i32
    %40 = arith.cmpi eq, %arg1, %c2_i32_38 : i32
    %41 = arith.extui %40 : i1 to i32
    %c0_i32_39 = arith.constant 0 : i32
    %42 = arith.cmpi ne, %41, %c0_i32_39 : i32
    scf.if %42 {
      %cst_78 = arith.constant 0.000000e+00 : f32
      %82 = vector.broadcast %cst_78 : f32 to vector<1x24x32xf32>
      %c9 = arith.constant 9 : index
      %c0_79 = arith.constant 0 : index
      %c0_80 = arith.constant 0 : index
      %83 = vector.load %arg14[%c9, %c0_79, %c0_80] : memref<10x24x32xf32, #tpu.memory_space<vmem>>, vector<1x24x32xf32>
      tpu.vector_store %arg14[%c9, %c0_79, %c0_80], %82 {strides = array<i32>} : memref<10x24x32xf32, #tpu.memory_space<vmem>>, vector<1x24x32xf32>,
    } else {
    }
    %c0_40 = arith.constant 0 : index
    %c0_41 = arith.constant 0 : index
    %c0_42 = arith.constant 0 : index
    %43 = vector.load %arg14[%c0_40, %c0_41, %c0_42] : memref<10x24x32xf32, #tpu.memory_space<vmem>>, vector<8x16x32xf32>
    %44 = vector.shape_cast %43 : vector<8x16x32xf32> to vector<128x32xf32>
    %c0_43 = arith.constant 0 : index
    %c1_44 = arith.constant 1 : index
    %c0_45 = arith.constant 0 : index
    %45 = vector.load %arg14[%c0_43, %c1_44, %c0_45] : memref<10x24x32xf32, #tpu.memory_space<vmem>>, vector<8x16x32xf32>
    %46 = vector.shape_cast %45 : vector<8x16x32xf32> to vector<128x32xf32>
    %c0_46 = arith.constant 0 : index
    %c2 = arith.constant 2 : index
    %c0_47 = arith.constant 0 : index
    %47 = vector.load %arg14[%c0_46, %c2, %c0_47] : memref<10x24x32xf32, #tpu.memory_space<vmem>>, vector<8x16x32xf32>
    %48 = vector.shape_cast %47 : vector<8x16x32xf32> to vector<128x32xf32>
    %c1_48 = arith.constant 1 : index
    %c0_49 = arith.constant 0 : index
    %c0_50 = arith.constant 0 : index
    %49 = vector.load %arg14[%c1_48, %c0_49, %c0_50] : memref<10x24x32xf32, #tpu.memory_space<vmem>>, vector<8x16x32xf32>
    %50 = vector.shape_cast %49 : vector<8x16x32xf32> to vector<128x32xf32>
    %c1_51 = arith.constant 1 : index
    %c1_52 = arith.constant 1 : index
    %c0_53 = arith.constant 0 : index
    %51 = vector.load %arg14[%c1_51, %c1_52, %c0_53] : memref<10x24x32xf32, #tpu.memory_space<vmem>>, vector<8x16x32xf32>
    %52 = vector.shape_cast %51 : vector<8x16x32xf32> to vector<128x32xf32>
    %c1_54 = arith.constant 1 : index
    %c2_55 = arith.constant 2 : index
    %c0_56 = arith.constant 0 : index
    %53 = vector.load %arg14[%c1_54, %c2_55, %c0_56] : memref<10x24x32xf32, #tpu.memory_space<vmem>>, vector<8x16x32xf32>
    %54 = vector.shape_cast %53 : vector<8x16x32xf32> to vector<128x32xf32>
    %c2_57 = arith.constant 2 : index
    %c0_58 = arith.constant 0 : index
    %c0_59 = arith.constant 0 : index
    %55 = vector.load %arg14[%c2_57, %c0_58, %c0_59] : memref<10x24x32xf32, #tpu.memory_space<vmem>>, vector<8x16x32xf32>
    %56 = vector.shape_cast %55 : vector<8x16x32xf32> to vector<128x32xf32>
    %c2_60 = arith.constant 2 : index
    %c1_61 = arith.constant 1 : index
    %c0_62 = arith.constant 0 : index
    %57 = vector.load %arg14[%c2_60, %c1_61, %c0_62] : memref<10x24x32xf32, #tpu.memory_space<vmem>>, vector<8x16x32xf32>
    %58 = vector.shape_cast %57 : vector<8x16x32xf32> to vector<128x32xf32>
    %c2_63 = arith.constant 2 : index
    %c2_64 = arith.constant 2 : index
    %c0_65 = arith.constant 0 : index
    %59 = vector.load %arg14[%c2_63, %c2_64, %c0_65] : memref<10x24x32xf32, #tpu.memory_space<vmem>>, vector<8x16x32xf32>
    %60 = vector.shape_cast %59 : vector<8x16x32xf32> to vector<128x32xf32>
    %61 = tpu.concatenate %44, %46, %48, %50, %52, %54, %56, %58, %60 in 1 : vector<128x32xf32>, vector<128x32xf32>, vector<128x32xf32>, vector<128x32xf32>, vector<128x32xf32>, vector<128x32xf32>, vector<128x32xf32>, vector<128x32xf32>, vector<128x32xf32> -> vector<128x288xf32>
    %cst_66 = arith.constant dense<0.000000e+00> : vector<128x32xf32>
    %62 = tpu.matmul %61, %8, %cst_66 {dimension_numbers = #tpu.dot_dimension_numbers<[1], [0], [0], [1], [0, 0, 1, 1], [], []>} : vector<128x288xf32>, vector<288x32xf32>, vector<128x32xf32> -> vector<128x32xf32>
    %63 = vector.broadcast %12 : vector<1x32xf32> to vector<128x32xf32>
    %64 = arith.mulf %62, %63 : vector<128x32xf32>
    %65 = vector.broadcast %13 : vector<1x32xf32> to vector<128x32xf32>
    %66 = arith.addf %64, %65 : vector<128x32xf32>
    %cst_67 = arith.constant 0.000000e+00 : f32
    %67 = vector.broadcast %cst_67 : f32 to vector<128x32xf32>
    %68 = arith.maximumf %66, %67 : vector<128x32xf32>
    %cst_68 = arith.constant dense<0.000000e+00> : vector<128x128xf32>
    %69 = tpu.matmul %68, %9, %cst_68 {dimension_numbers = #tpu.dot_dimension_numbers<[1], [0], [0], [1], [0, 0, 1, 1], [], []>} : vector<128x32xf32>, vector<32x128xf32>, vector<128x128xf32> -> vector<128x128xf32>
    %c0_69 = arith.constant 0 : index
    %c0_70 = arith.constant 0 : index
    %c0_71 = arith.constant 0 : index
    %c0_72 = arith.constant 0 : index
    %70 = vector.load %arg2[%c0_69, %c0_70, %c0_71, %c0_72] : memref<1x8x16x128xf32, #tpu.memory_space<vmem>>, vector<1x8x16x128xf32>
    %71 = vector.shape_cast %70 : vector<1x8x16x128xf32> to vector<8x16x128xf32>
    %72 = vector.shape_cast %71 : vector<8x16x128xf32> to vector<128x128xf32>
    %73 = vector.broadcast %14 : vector<1x128xf32> to vector<128x128xf32>
    %74 = arith.mulf %69, %73 : vector<128x128xf32>
    %75 = vector.broadcast %15 : vector<1x128xf32> to vector<128x128xf32>
    %76 = arith.addf %74, %75 : vector<128x128xf32>
    %77 = arith.addf %76, %72 : vector<128x128xf32>
    %cst_73 = arith.constant 0.000000e+00 : f32
    %78 = vector.broadcast %cst_73 : f32 to vector<128x128xf32>
    %79 = arith.maximumf %77, %78 : vector<128x128xf32>
    %80 = vector.shape_cast %79 : vector<128x128xf32> to vector<1x8x16x128xf32>
    %c0_74 = arith.constant 0 : index
    %c0_75 = arith.constant 0 : index
    %c0_76 = arith.constant 0 : index
    %c0_77 = arith.constant 0 : index
    %81 = vector.load %arg13[%c0_74, %c0_75, %c0_76, %c0_77] : memref<1x8x16x128xf32, #tpu.memory_space<vmem>>, vector<1x8x16x128xf32>
    tpu.vector_store %arg13[%c0_74, %c0_75, %c0_76, %c0_77], %80 {strides = array<i32>} : memref<1x8x16x128xf32, #tpu.memory_space<vmem>>, vector<1x8x16x128xf32>,
    return
  }
  func.func @transform_0(%arg0: i32, %arg1: i32) -> (i32, i32, i32, i32) {
    %c0_i32 = arith.constant 0 : i32
    %c0_i32_0 = arith.constant 0 : i32
    %c0_i32_1 = arith.constant 0 : i32
    return %arg0, %arg1, %c0_i32, %c0_i32_0 : i32, i32, i32, i32
  }
  func.func @transform_2(%arg0: i32, %arg1: i32) -> (i32, i32) {
    %c0_i32 = arith.constant 0 : i32
    %c0_i32_0 = arith.constant 0 : i32
    %c0_i32_1 = arith.constant 0 : i32
    return %c0_i32, %c0_i32_0 : i32, i32
  }
  func.func @transform_3(%arg0: i32, %arg1: i32) -> (i32, i32) {
    %c0_i32 = arith.constant 0 : i32
    %c0_i32_0 = arith.constant 0 : i32
    %c0_i32_1 = arith.constant 0 : i32
    return %c0_i32, %c0_i32_0 : i32, i32
  }
  func.func @transform_4(%arg0: i32, %arg1: i32) -> (i32, i32) {
    %c0_i32 = arith.constant 0 : i32
    %c0_i32_0 = arith.constant 0 : i32
    %c0_i32_1 = arith.constant 0 : i32
    return %c0_i32, %c0_i32_0 : i32, i32
  }
  func.func @transform_5(%arg0: i32, %arg1: i32) -> (i32, i32) {
    %c0_i32 = arith.constant 0 : i32
    %c0_i32_0 = arith.constant 0 : i32
    %c0_i32_1 = arith.constant 0 : i32
    return %c0_i32, %c0_i32_0 : i32, i32
  }
  func.func @transform_6(%arg0: i32, %arg1: i32) -> (i32, i32) {
    %c0_i32 = arith.constant 0 : i32
    %c0_i32_0 = arith.constant 0 : i32
    %c0_i32_1 = arith.constant 0 : i32
    return %c0_i32, %c0_i32_0 : i32, i32
  }
  func.func @transform_7(%arg0: i32, %arg1: i32) -> (i32, i32) {
    %c0_i32 = arith.constant 0 : i32
    %c0_i32_0 = arith.constant 0 : i32
    %c0_i32_1 = arith.constant 0 : i32
    return %c0_i32, %c0_i32_0 : i32, i32
  }
  func.func @transform_8(%arg0: i32, %arg1: i32) -> (i32, i32) {
    %c0_i32 = arith.constant 0 : i32
    %c0_i32_0 = arith.constant 0 : i32
    %c0_i32_1 = arith.constant 0 : i32
    return %c0_i32, %c0_i32_0 : i32, i32
  }
  func.func @transform_9(%arg0: i32, %arg1: i32) -> (i32, i32) {
    %c0_i32 = arith.constant 0 : i32
    %c0_i32_0 = arith.constant 0 : i32
    %c0_i32_1 = arith.constant 0 : i32
    return %c0_i32, %c0_i32_0 : i32, i32
  }
  func.func @transform_10(%arg0: i32, %arg1: i32) -> (i32, i32) {
    %c0_i32 = arith.constant 0 : i32
    %c0_i32_0 = arith.constant 0 : i32
    %c0_i32_1 = arith.constant 0 : i32
    return %c0_i32, %c0_i32_0 : i32, i32
  }
  func.func @transform_11(%arg0: i32, %arg1: i32) -> (i32, i32, i32, i32) {
    %c0_i32 = arith.constant 0 : i32
    %c0_i32_0 = arith.constant 0 : i32
    %c0_i32_1 = arith.constant 0 : i32
    return %arg0, %arg1, %c0_i32, %c0_i32_0 : i32, i32, i32, i32
  }
}

</mosaic_0001>

<llo_original>
// kernel: tpu_custom_call.1
$region0: #{tpu_custom_call.1}
  #allocation0 [shape = 'u32[]', space=smem, size = 0x4, offset = 0x4, fixed_abs, tag = 'smem constant byte address 0x4 - core index']
  #allocation1 [shape = 'u32[72,128]{1,0:T(1,128)}', space=vmem, size = 0x9000, scoped, tag = 'internal scratch']
  #allocation2 [shape = 'f32[10,24,32]{2,1,0:T(8,128)}', space=vmem, size = 0x1e000, scoped, tag = 'scratch operand']
  #allocation3 [shape = 'f32[2,16,128]{2,1,0:T(8,128)}', space=vmem, size = 0x4000, scoped, tag = 'scratch operand']
  #allocation4 [shape = 's32[2]{0}', space=sflag, size = 0x8, scoped, tag = 'scratch operand']
  #allocation9 [shape = 's32[]', space=sflag, size = 0x4, offset = 0, fixed_abs, tag = 'sflag constant byte address 0x0 - dummy sync flag']
  #allocation10 [shape = 's32[]', space=sflag, size = 0x4, offset = 0, fixed_abs, tag = 'sflag constant byte address 0x0 - dummy sync flag']
  #allocation11 [shape = 'u32[]', space=smem, size = 0x4, offset = 0x44, fixed_abs, tag = 'smem constant byte address 0x44 - assertion arg 0']
  #allocation12 [shape = 'u32[]', space=smem, size = 0x4, offset = 0x48, fixed_abs, tag = 'smem constant byte address 0x48 - assertion arg 1']
  #allocation13 [shape = 's32[]', space=sflag, size = 0x4, offset = 0, fixed_abs, tag = 'sflag constant byte address 0x0 - dummy sync flag']
  #allocation14 [shape = 's32[]', space=sflag, size = 0x4, offset = 0, fixed_abs, tag = 'sflag constant byte address 0x0 - dummy sync flag']
  %s0 = inlined_call_operand.hbm [shape: f32[2,24,16,128], index: 0, kind: input, shape index: {}]
  %s1 = inlined_call_operand.hbm [shape: f32[2,24,16,128], index: 1, kind: input, shape index: {}]
  %s2 = inlined_call_operand.vmem [shape: f32[128,32], index: 2, kind: input, shape index: {}]
  %s3 = inlined_call_operand.vmem [shape: f32[288,32], index: 3, kind: input, shape index: {}]
  %s4 = inlined_call_operand.vmem [shape: f32[32,128], index: 4, kind: input, shape index: {}]
  %s5 = inlined_call_operand.vmem [shape: f32[1,32], index: 5, kind: input, shape index: {}]
  %s6 = inlined_call_operand.vmem [shape: f32[1,32], index: 6, kind: input, shape index: {}]
  %s7 = inlined_call_operand.vmem [shape: f32[1,32], index: 7, kind: input, shape index: {}]
  %s8 = inlined_call_operand.vmem [shape: f32[1,32], index: 8, kind: input, shape index: {}]
  %s9 = inlined_call_operand.vmem [shape: f32[1,128], index: 9, kind: input, shape index: {}]
  %s10 = inlined_call_operand.vmem [shape: f32[1,128], index: 10, kind: input, shape index: {}]
  %s11 = inlined_call_operand.hbm [shape: f32[2,24,16,128], index: 11, kind: output, shape index: {}]
  %s12 = sld [smem:[#allocation0]]
  $region109: #{tpu_custom_call.1} parent=0
    _
  %s14 = ssub.s32 1, %s12
  %s15 = scalar_select 0, %s14, %s12
  $region1: #{tpu_custom_call.1} parent=0
    #allocation5 [shape = 'u8[131072]{0}', space=vmem, size = 0x20000, scoped, tag = 'input window, operand 0']
    #allocation6 [shape = 's32[2]{0}', space=sflag, size = 0x8, scoped, tag = 'scoped memory for tpu_custom_call.1']
    #allocation7 [shape = 's32[2]{0}', space=sflag, size = 0x8, scoped, tag = 'scoped memory for tpu_custom_call.1']
    #allocation8 [shape = 'u8[131072]{0}', space=vmem, size = 0x20000, scoped, tag = 'output window, operand 0']
    %16 = vsyncpa [#allocation6], 0
    %s17 = scalar_lea.sflag [#allocation6], 1
    %18 = vsyncpa %s17, 0
    %19 = vsyncpa [#allocation7], 0
    %s20 = scalar_lea.sflag [#allocation7], 1
    %21 = vsyncpa %s20, 0
    loop: start=0, step=1, limit=8
    $region2: #{tpu_custom_call.1} parent=1 // loop_pre_header
      _
    $region3: #{tpu_custom_call.1} parent=1 // loop_header
      %s23 = sphi 0, %s27
      %p24 = scmp.ge.s32.totalorder %s23, 8
      %s30 = sphi 0, %s42
      %s31 = sphi 0, %s38
      %s32 = sphi 0, %s30
      %s33 = sphi 0, %s31
      %s34 = sphi 0, %s32
      %s35 = sphi 0, %s33
      %s47 = sphi 0, %s49
      %s50 = sphi 0, %s47
      %s51 = sphi 0, %s50
      %s67 = sphi 0, %s51
      %s71 = sphi 0, %s71
      %s73 = sphi 0, %s71
      %s74 = sphi 0, %s73
      %s88 = sphi 0, %s74
      %s92 = sphi 0, %s92
      %s94 = sphi 0, %s92
      %s95 = sphi 0, %s94
      %s109 = sphi 0, %s95
      %s113 = sphi 0, %s113
      %s115 = sphi 0, %s113
      %s116 = sphi 0, %s115
      %s130 = sphi 0, %s116
      %s134 = sphi 0, %s134
      %s136 = sphi 0, %s134
      %s137 = sphi 0, %s136
      %s151 = sphi 0, %s137
      %s155 = sphi 0, %s155
      %s157 = sphi 0, %s155
      %s158 = sphi 0, %s157
      %s172 = sphi 0, %s158
      %s176 = sphi 0, %s176
      %s178 = sphi 0, %s176
      %s179 = sphi 0, %s178
      %s193 = sphi 0, %s179
      %s197 = sphi 0, %s197
      %s199 = sphi 0, %s197
      %s200 = sphi 0, %s199
      %s214 = sphi 0, %s200
      %s218 = sphi 0, %s218
      %s220 = sphi 0, %s218
      %s221 = sphi 0, %s220
      %s235 = sphi 0, %s221
      %s239 = sphi 0, %s239
      %s241 = sphi 0, %s239
      %s242 = sphi 0, %s241
      %s256 = sphi 0, %s242
      %s264 = sphi 0, %s266
      %s267 = sphi 0, %s264
      %s268 = sphi 0, %s267
      %s284 = sphi 0, %s268
    $region4: #{tpu_custom_call.1} parent=1 // loop_header_branch
      %26 = sbr.rel (%p24) target = $region8
    $region5: #{tpu_custom_call.1} parent=1 // loop_body
      %s28 = ssub.s32 %s23, 1
      %s29 = ssub.s32 %s23, 2
      %s36 = sadd.s32 1, %s31
      %p37 = scmp.ge.s32.totalorder %s36, 3
      %s38 = scalar_select %p37, 0, %s36
      %s39 = sadd.s32 1, %s30
      %s40 = scalar_select %p37, %s39, %s30
      %p41 = scmp.ge.s32.totalorder %s40, 2
      %s42 = scalar_select %p41, 0, %s40
      %s43 = ssub.s32 %s30, %s42
      %s44 = ssub.s32 %s31, %s38
      %s45 = sor.u32 %s43, %s44
      %p46 = scmp.eq.s32.totalorder %s45, 0
      %s48 = sadd.s32 %s47, 1
      %s49 = scalar_select %p46, %s47, %s48
      %p52 = pneg %p46
      %p53 = scmp.eq.s32.totalorder %s23, 5
      %p54 = por %p52, %p53
      %p55 = scmp.ne.s32.totalorder %s47, %s50
      %p56 = scmp.eq.s32.totalorder %s23, 0
      %p57 = por %p55, %p56
      %p58 = scmp.ne.s32.totalorder %s47, %s50
      %p59 = scmp.eq.s32.totalorder %s28, 5
      %p60 = por %p58, %p59
      %p61 = scmp.ne.s32.totalorder %s50, %s51
      %p62 = scmp.eq.s32.totalorder %s28, 0
      %p63 = por %p61, %p62
      %p64 = scmp.ne.s32.totalorder %s50, %s51
      %p65 = scmp.eq.s32.totalorder %s29, 5
      %p66 = por %p64, %p65
      %p68 = scmp.ne.s32.totalorder %s51, %s67
      %p69 = scmp.eq.s32.totalorder %s29, 0
      %p70 = por %p68, %p69
      %s72 = sadd.s32 %s71, 1
      %p75 = scmp.eq.s32.totalorder %s23, 5
      %p76 = scmp.ne.s32.totalorder %s71, %s73
      %p77 = scmp.eq.s32.totalorder %s23, 0
      %p78 = por %p76, %p77
      %p79 = scmp.ne.s32.totalorder %s71, %s73
      %p80 = scmp.eq.s32.totalorder %s28, 5
      %p81 = por %p79, %p80
      %p82 = scmp.ne.s32.totalorder %s73, %s74
      %p83 = scmp.eq.s32.totalorder %s28, 0
      %p84 = por %p82, %p83
      %p85 = scmp.ne.s32.totalorder %s73, %s74
      %p86 = scmp.eq.s32.totalorder %s29, 5
      %p87 = por %p85, %p86
      %p89 = scmp.ne.s32.totalorder %s74, %s88
      %p90 = scmp.eq.s32.totalorder %s29, 0
      %p91 = por %p89, %p90
      %s93 = sadd.s32 %s92, 1
      %p96 = scmp.eq.s32.totalorder %s23, 5
      %p97 = scmp.ne.s32.totalorder %s92, %s94
      %p98 = scmp.eq.s32.totalorder %s23, 0
      %p99 = por %p97, %p98
      %p100 = scmp.ne.s32.totalorder %s92, %s94
      %p101 = scmp.eq.s32.totalorder %s28, 5
      %p102 = por %p100, %p101
      %p103 = scmp.ne.s32.totalorder %s94, %s95
      %p104 = scmp.eq.s32.totalorder %s28, 0
      %p105 = por %p103, %p104
      %p106 = scmp.ne.s32.totalorder %s94, %s95
      %p107 = scmp.eq.s32.totalorder %s29, 5
      %p108 = por %p106, %p107
      %p110 = scmp.ne.s32.totalorder %s95, %s109
      %p111 = scmp.eq.s32.totalorder %s29, 0
      %p112 = por %p110, %p111
      %s114 = sadd.s32 %s113, 1
      %p117 = scmp.eq.s32.totalorder %s23, 5
      %p118 = scmp.ne.s32.totalorder %s113, %s115
      %p119 = scmp.eq.s32.totalorder %s23, 0
      %p120 = por %p118, %p119
      %p121 = scmp.ne.s32.totalorder %s113, %s115
      %p122 = scmp.eq.s32.totalorder %s28, 5
      %p123 = por %p121, %p122
      %p124 = scmp.ne.s32.totalorder %s115, %s116
      %p125 = scmp.eq.s32.totalorder %s28, 0
      %p126 = por %p124, %p125
      %p127 = scmp.ne.s32.totalorder %s115, %s116
      %p128 = scmp.eq.s32.totalorder %s29, 5
      %p129 = por %p127, %p128
      %p131 = scmp.ne.s32.totalorder %s116, %s130
      %p132 = scmp.eq.s32.totalorder %s29, 0
      %p133 = por %p131, %p132
      %s135 = sadd.s32 %s134, 1
      %p138 = scmp.eq.s32.totalorder %s23, 5
      %p139 = scmp.ne.s32.totalorder %s134, %s136
      %p140 = scmp.eq.s32.totalorder %s23, 0
      %p141 = por %p139, %p140
      %p142 = scmp.ne.s32.totalorder %s134, %s136
      %p143 = scmp.eq.s32.totalorder %s28, 5
      %p144 = por %p142, %p143
      %p145 = scmp.ne.s32.totalorder %s136, %s137
      %p146 = scmp.eq.s32.totalorder %s28, 0
      %p147 = por %p145, %p146
      %p148 = scmp.ne.s32.totalorder %s136, %s137
      %p149 = scmp.eq.s32.totalorder %s29, 5
      %p150 = por %p148, %p149
      %p152 = scmp.ne.s32.totalorder %s137, %s151
      %p153 = scmp.eq.s32.totalorder %s29, 0
      %p154 = por %p152, %p153
      %s156 = sadd.s32 %s155, 1
      %p159 = scmp.eq.s32.totalorder %s23, 5
      %p160 = scmp.ne.s32.totalorder %s155, %s157
      %p161 = scmp.eq.s32.totalorder %s23, 0
      %p162 = por %p160, %p161
      %p163 = scmp.ne.s32.totalorder %s155, %s157
      %p164 = scmp.eq.s32.totalorder %s28, 5
      %p165 = por %p163, %p164
      %p166 = scmp.ne.s32.totalorder %s157, %s158
      %p167 = scmp.eq.s32.totalorder %s28, 0
      %p168 = por %p166, %p167
      %p169 = scmp.ne.s32.totalorder %s157, %s158
      %p170 = scmp.eq.s32.totalorder %s29, 5
      %p171 = por %p169, %p170
      %p173 = scmp.ne.s32.totalorder %s158, %s172
      %p174 = scmp.eq.s32.totalorder %s29, 0
      %p175 = por %p173, %p174
      %s177 = sadd.s32 %s176, 1
      %p180 = scmp.eq.s32.totalorder %s23, 5
      %p181 = scmp.ne.s32.totalorder %s176, %s178
      %p182 = scmp.eq.s32.totalorder %s23, 0
      %p183 = por %p181, %p182
      %p184 = scmp.ne.s32.totalorder %s176, %s178
      %p185 = scmp.eq.s32.totalorder %s28, 5
      %p186 = por %p184, %p185
      %p187 = scmp.ne.s32.totalorder %s178, %s179
      %p188 = scmp.eq.s32.totalorder %s28, 0
      %p189 = por %p187, %p188
      %p190 = scmp.ne.s32.totalorder %s178, %s179
      %p191 = scmp.eq.s32.totalorder %s29, 5
      %p192 = por %p190, %p191
      %p194 = scmp.ne.s32.totalorder %s179, %s193
      %p195 = scmp.eq.s32.totalorder %s29, 0
      %p196 = por %p194, %p195
      %s198 = sadd.s32 %s197, 1
      %p201 = scmp.eq.s32.totalorder %s23, 5
      %p202 = scmp.ne.s32.totalorder %s197, %s199
      %p203 = scmp.eq.s32.totalorder %s23, 0
      %p204 = por %p202, %p203
      %p205 = scmp.ne.s32.totalorder %s197, %s199
      %p206 = scmp.eq.s32.totalorder %s28, 5
      %p207 = por %p205, %p206
      %p208 = scmp.ne.s32.totalorder %s199, %s200
      %p209 = scmp.eq.s32.totalorder %s28, 0
      %p210 = por %p208, %p209
      %p211 = scmp.ne.s32.totalorder %s199, %s200
      %p212 = scmp.eq.s32.totalorder %s29, 5
      %p213 = por %p211, %p212
      %p215 = scmp.ne.s32.totalorder %s200, %s214
      %p216 = scmp.eq.s32.totalorder %s29, 0
      %p217 = por %p215, %p216
      %s219 = sadd.s32 %s218, 1
      %p222 = scmp.eq.s32.totalorder %s23, 5
      %p223 = scmp.ne.s32.totalorder %s218, %s220
      %p224 = scmp.eq.s32.totalorder %s23, 0
      %p225 = por %p223, %p224
      %p226 = scmp.ne.s32.totalorder %s218, %s220
      %p227 = scmp.eq.s32.totalorder %s28, 5
      %p228 = por %p226, %p227
      %p229 = scmp.ne.s32.totalorder %s220, %s221
      %p230 = scmp.eq.s32.totalorder %s28, 0
      %p231 = por %p229, %p230
      %p232 = scmp.ne.s32.totalorder %s220, %s221
      %p233 = scmp.eq.s32.totalorder %s29, 5
      %p234 = por %p232, %p233
      %p236 = scmp.ne.s32.totalorder %s221, %s235
      %p237 = scmp.eq.s32.totalorder %s29, 0
      %p238 = por %p236, %p237
      %s240 = sadd.s32 %s239, 1
      %p243 = scmp.eq.s32.totalorder %s23, 5
      %p244 = scmp.ne.s32.totalorder %s239, %s241
      %p245 = scmp.eq.s32.totalorder %s23, 0
      %p246 = por %p244, %p245
      %p247 = scmp.ne.s32.totalorder %s239, %s241
      %p248 = scmp.eq.s32.totalorder %s28, 5
      %p249 = por %p247, %p248
      %p250 = scmp.ne.s32.totalorder %s241, %s242
      %p251 = scmp.eq.s32.totalorder %s28, 0
      %p252 = por %p250, %p251
      %p253 = scmp.ne.s32.totalorder %s241, %s242
      %p254 = scmp.eq.s32.totalorder %s29, 5
      %p255 = por %p253, %p254
      %p257 = scmp.ne.s32.totalorder %s242, %s256
      %p258 = scmp.eq.s32.totalorder %s29, 0
      %p259 = por %p257, %p258
      %s260 = ssub.s32 %s30, %s42
      %s261 = ssub.s32 %s31, %s38
      %s262 = sor.u32 %s260, %s261
      %p263 = scmp.eq.s32.totalorder %s262, 0
      %s265 = sadd.s32 %s264, 1
      %s266 = scalar_select %p263, %s264, %s265
      %p269 = pneg %p263
      %p270 = scmp.eq.s32.totalorder %s23, 5
      %p271 = por %p269, %p270
      %p272 = scmp.ne.s32.totalorder %s264, %s267
      %p273 = scmp.eq.s32.totalorder %s23, 0
      %p274 = por %p272, %p273
      %p275 = scmp.ne.s32.totalorder %s264, %s267
      %p276 = scmp.eq.s32.totalorder %s28, 5
      %p277 = por %p275, %p276
      %p278 = scmp.ne.s32.totalorder %s267, %s268
      %p279 = scmp.eq.s32.totalorder %s28, 0
      %p280 = por %p278, %p279
      %p281 = scmp.ne.s32.totalorder %s267, %s268
      %p282 = scmp.eq.s32.totalorder %s29, 5
      %p283 = por %p281, %p282
      %p285 = scmp.ne.s32.totalorder %s268, %s284
      %p286 = scmp.eq.s32.totalorder %s29, 0
      %p287 = por %p285, %p286
      %p288 = scmp.le.s32.totalorder 1, %s23
      %p289 = scmp.lt.s32.totalorder %s23, 7
      %p290 = pnand %p288, %p289
      %p291 = pneg %p290
      // Predicated region
      $region9: #{tpu_custom_call.1} parent=5 // pred_check
        _
      $region10: #{tpu_custom_call.1} parent=5 // pred_check_branch
        %293 = sbr.rel (%p290) target = $region12
      $region11: #{tpu_custom_call.1} parent=5 // pred_region
        %s294 = ssub.s32 %s23, 1
        // Predicated region
        $region13: #{tpu_custom_call.1} parent=11 // pred_check
          %p295 = pneg %p84
        $region14: #{tpu_custom_call.1} parent=11 // pred_check_branch
          %297 = sbr.rel (%p295) target = $region16
        $region15: #{tpu_custom_call.1} parent=11 // pred_region
          _
        $region16: #{tpu_custom_call.1} parent=11 // pred_fallthru
          _
        // Predicated region
        $region17: #{tpu_custom_call.1} parent=11 // pred_check
          %p298 = pneg %p105
        $region18: #{tpu_custom_call.1} parent=11 // pred_check_branch
          %300 = sbr.rel (%p298) target = $region20
        $region19: #{tpu_custom_call.1} parent=11 // pred_region
          _
        $region20: #{tpu_custom_call.1} parent=11 // pred_fallthru
          _
        // Predicated region
        $region21: #{tpu_custom_call.1} parent=11 // pred_check
          %p301 = pneg %p126
        $region22: #{tpu_custom_call.1} parent=11 // pred_check_branch
          %303 = sbr.rel (%p301) target = $region24
        $region23: #{tpu_custom_call.1} parent=11 // pred_region
          _
        $region24: #{tpu_custom_call.1} parent=11 // pred_fallthru
          _
        // Predicated region
        $region25: #{tpu_custom_call.1} parent=11 // pred_check
          %p304 = pneg %p147
        $region26: #{tpu_custom_call.1} parent=11 // pred_check_branch
          %306 = sbr.rel (%p304) target = $region28
        $region27: #{tpu_custom_call.1} parent=11 // pred_region
          _
        $region28: #{tpu_custom_call.1} parent=11 // pred_fallthru
          _
        // Predicated region
        $region29: #{tpu_custom_call.1} parent=11 // pred_check
          %p307 = pneg %p168
        $region30: #{tpu_custom_call.1} parent=11 // pred_check_branch
          %309 = sbr.rel (%p307) target = $region32
        $region31: #{tpu_custom_call.1} parent=11 // pred_region
          _
        $region32: #{tpu_custom_call.1} parent=11 // pred_fallthru
          _
        // Predicated region
        $region33: #{tpu_custom_call.1} parent=11 // pred_check
          %p310 = pneg %p189
        $region34: #{tpu_custom_call.1} parent=11 // pred_check_branch
          %312 = sbr.rel (%p310) target = $region36
        $region35: #{tpu_custom_call.1} parent=11 // pred_region
          _
        $region36: #{tpu_custom_call.1} parent=11 // pred_fallthru
          _
        // Predicated region
        $region37: #{tpu_custom_call.1} parent=11 // pred_check
          %p313 = pneg %p210
        $region38: #{tpu_custom_call.1} parent=11 // pred_check_branch
          %315 = sbr.rel (%p313) target = $region40
        $region39: #{tpu_custom_call.1} parent=11 // pred_region
          _
        $region40: #{tpu_custom_call.1} parent=11 // pred_fallthru
          _
        // Predicated region
        $region41: #{tpu_custom_call.1} parent=11 // pred_check
          %p316 = pneg %p231
        $region42: #{tpu_custom_call.1} parent=11 // pred_check_branch
          %318 = sbr.rel (%p316) target = $region44
        $region43: #{tpu_custom_call.1} parent=11 // pred_region
          _
        $region44: #{tpu_custom_call.1} parent=11 // pred_fallthru
          _
        // Predicated region
        $region45: #{tpu_custom_call.1} parent=11 // pred_check
          %p319 = pneg %p252
        $region46: #{tpu_custom_call.1} parent=11 // pred_check_branch
          %321 = sbr.rel (%p319) target = $region48
        $region47: #{tpu_custom_call.1} parent=11 // pred_region
          _
        $region48: #{tpu_custom_call.1} parent=11 // pred_fallthru
          _
      $region12: #{tpu_custom_call.1} parent=5 // pred_fallthru
        _
      %p322 = scmp.lt.s32.totalorder %s23, 6
      // Predicated region
      $region49: #{tpu_custom_call.1} parent=5 // pred_check
        %p323 = pneg %p322
      $region50: #{tpu_custom_call.1} parent=5 // pred_check_branch
        %325 = sbr.rel (%p323) target = $region52
      $region51: #{tpu_custom_call.1} parent=5 // pred_region
        // Predicated region
        $region53: #{tpu_custom_call.1} parent=51 // pred_check
          %p326 = pneg %p57
        $region54: #{tpu_custom_call.1} parent=51 // pred_check_branch
          %328 = sbr.rel (%p326) target = $region56
        $region55: #{tpu_custom_call.1} parent=51 // pred_region
          %s329 = sand.u32 %s47, 1
          %s330 = scalar_lea.sflag [#allocation6], %s329
          %s331 = sand.u32 %s47, 1
          %s332 = smul.addr %s331, 128
          %s333 = scalar_lea.vmem [#allocation5], %s332
          %s334 = smul.u32 8, %s31
          %336 = vsyncadd %s330, 0
          %s337 = smul.addr %s334, 2
          %s338 = smul.addr %s30, 48
          %s339 = sadd.s32 %s337, %s338
          %s340 = smul.addr %s339, 8
          %s341 = scalar_lea.hbm %s0, %s340
          %s342 = sshll.u32 %s341, 4
          %s343 = int_to_ptr.hbm [resolvable:$true] %s342
          %s344 = sshll.u32 %s333, 4
          %s345 = int_to_ptr.vmem [resolvable:$true] %s344
          %350 = dma.hbm_to_vmem [thread:$0]  %s343, 2048, %s345, %s330, 128, 128, 8
        $region56: #{tpu_custom_call.1} parent=51 // pred_fallthru
          _
      $region52: #{tpu_custom_call.1} parent=5 // pred_fallthru
        _
      %p351 = scmp.le.s32.totalorder 1, %s23
      %p352 = scmp.lt.s32.totalorder %s23, 7
      %p353 = pnand %p351, %p352
      %p354 = pneg %p353
      // Predicated region
      $region57: #{tpu_custom_call.1} parent=5 // pred_check
        _
      $region58: #{tpu_custom_call.1} parent=5 // pred_check_branch
        %356 = sbr.rel (%p353) target = $region60
      $region59: #{tpu_custom_call.1} parent=5 // pred_region
        %s357 = ssub.s32 %s23, 1
        %s358 = sand.u32 %s50, 1
        %s359 = scalar_lea.sflag [#allocation6], %s358
        %s360 = sand.u32 %s50, 1
        %s361 = smul.addr %s360, 128
        %s362 = scalar_lea.vmem [#allocation5], %s361
        // Predicated region
        $region61: #{tpu_custom_call.1} parent=59 // pred_check
          %p363 = pneg %p63
        $region62: #{tpu_custom_call.1} parent=59 // pred_check_branch
          %365 = sbr.rel (%p363) target = $region64
        $region63: #{tpu_custom_call.1} parent=59 // pred_region
          %367 = dma.done %s359, 2048
        $region64: #{tpu_custom_call.1} parent=59 // pred_fallthru
          _
        %s368 = sand.u32 %s50, 1
        %s369 = scalar_lea.sflag [#allocation6], %s368
        %s370 = sand.u32 %s50, 1
        %s371 = smul.addr %s370, 128
        %s372 = scalar_lea.vmem [#allocation5], %s371
        %p373 = pneg %p63
        %p374 = pneg %p60
        %p375 = pneg %p84
        %p376 = pneg %p81
        %p377 = pneg %p105
        %p378 = pneg %p102
        %p379 = pneg %p126
        %p380 = pneg %p123
        %p381 = pneg %p147
        %p382 = pneg %p144
        %p383 = pneg %p168
        %p384 = pneg %p165
        %p385 = pneg %p189
        %p386 = pneg %p186
        %p387 = pneg %p210
        %p388 = pneg %p207
        %p389 = pneg %p231
        %p390 = pneg %p228
        %p391 = pneg %p252
        %p392 = pneg %p249
        %p393 = pneg %p280
        %p394 = pneg %p277
        %s395 = sand.u32 %s267, 1
        %s396 = scalar_lea.sflag [#allocation7], %s395
        %s397 = sand.u32 %s267, 1
        %s398 = smul.addr %s397, 128
        %s399 = scalar_lea.vmem [#allocation8], %s398
        %s400 = smul.u32 8, %s33
        %s401 = smul.u32 8, %s33
        %s402 = smul.u32 %s33, 8
        %p403 = scmp.gt.s32.totalorder %s33, 0
        // Predicated region
        $region65: #{tpu_custom_call.1} parent=59 // pred_check
          %p404 = pneg %p403
        $region66: #{tpu_custom_call.1} parent=59 // pred_check_branch
          %406 = sbr.rel (%p404) target = $region68
        $region67: #{tpu_custom_call.1} parent=59 // pred_region
          %s407 = ssub.s32 %s402, 1
          %s408 = smul.u32 %s407, 16
          %s409 = smul.u32 %s32, 384
          %s410 = sadd.s32 %s408, %s409
          %s411 = scalar_lea.hbm %s1, %s410
          // Predicated region
          $region69: #{tpu_custom_call.1} parent=67 // pred_check
            _
          $region70: #{tpu_custom_call.1} parent=67 // pred_check_branch
            %413 = sbr.rel target = $region72
          $region71: #{tpu_custom_call.1} parent=67 // pred_region
            %414 = sst [smem:[#allocation11]] [#allocation10]
            %415 = sst [smem:[#allocation12]] [#allocation9]
          $region72: #{tpu_custom_call.1} parent=67 // pred_fallthru
            _
          %417 = shalt.err (0)
          %s419 = sshll.u32 %s411, 4
          %s420 = int_to_ptr.hbm [resolvable:$true] %s419
          %s421 = sshll.u32 [#allocation3], 4
          %s422 = int_to_ptr.vmem [resolvable:$true] %s421
          %424 = dma.hbm_to_vmem [thread:$0]  %s420, 256, %s422, [#allocation4]
        $region68: #{tpu_custom_call.1} parent=59 // pred_fallthru
          _
        %p425 = scmp.lt.s32.totalorder %s33, 2
        // Predicated region
        $region73: #{tpu_custom_call.1} parent=59 // pred_check
          %p426 = pneg %p425
        $region74: #{tpu_custom_call.1} parent=59 // pred_check_branch
          %428 = sbr.rel (%p426) target = $region76
        $region75: #{tpu_custom_call.1} parent=59 // pred_region
          %s429 = sadd.s32 %s402, 8
          %s430 = smul.u32 %s429, 16
          %s431 = smul.u32 %s32, 384
          %s432 = sadd.s32 %s430, %s431
          %s433 = scalar_lea.hbm %s1, %s432
          %s434 = scalar_lea.vmem [#allocation3], 16
          %s435 = scalar_lea.sflag [#allocation4], 1
          // Predicated region
          $region77: #{tpu_custom_call.1} parent=75 // pred_check
            _
          $region78: #{tpu_custom_call.1} parent=75 // pred_check_branch
            %437 = sbr.rel target = $region80
          $region79: #{tpu_custom_call.1} parent=75 // pred_region
            %438 = sst [smem:[#allocation11]] [#allocation14]
            %439 = sst [smem:[#allocation12]] [#allocation13]
          $region80: #{tpu_custom_call.1} parent=75 // pred_fallthru
            _
          %441 = shalt.err (0)
          %s443 = sshll.u32 %s433, 4
          %s444 = int_to_ptr.hbm [resolvable:$true] %s443
          %s445 = sshll.u32 %s434, 4
          %s446 = int_to_ptr.vmem [resolvable:$true] %s445
          %448 = dma.hbm_to_vmem [thread:$0]  %s444, 256, %s446, %s435
        $region76: #{tpu_custom_call.1} parent=59 // pred_fallthru
          _
        %v449 = vld [vmem:[%s2] sm:$0xff]
        %v450 = vld [vmem:[%s2 + $0x8] sm:$0xff]
        %v451 = vld [vmem:[%s2 + $0x10] sm:$0xff]
        %v452 = vld [vmem:[%s2 + $0x18] sm:$0xff]
        %v453 = vld [vmem:[%s2 + $0x20] sm:$0xff]
        %v454 = vld [vmem:[%s2 + $0x28] sm:$0xff]
        %v455 = vld [vmem:[%s2 + $0x30] sm:$0xff]
        %v456 = vld [vmem:[%s2 + $0x38] sm:$0xff]
        %v457 = vld [vmem:[%s2 + $0x40] sm:$0xff]
        %v458 = vld [vmem:[%s2 + $0x48] sm:$0xff]
        %v459 = vld [vmem:[%s2 + $0x50] sm:$0xff]
        %v460 = vld [vmem:[%s2 + $0x58] sm:$0xff]
        %v461 = vld [vmem:[%s2 + $0x60] sm:$0xff]
        %v462 = vld [vmem:[%s2 + $0x68] sm:$0xff]
        %v463 = vld [vmem:[%s2 + $0x70] sm:$0xff]
        %v464 = vld [vmem:[%s2 + $0x78] sm:$0xff]
        %v465 = vld [vmem:[%s3] sm:$0xff]
        %v466 = vld [vmem:[%s3 + $0x8] sm:$0xff]
        %v467 = vld [vmem:[%s3 + $0x10] sm:$0xff]
        %v468 = vld [vmem:[%s3 + $0x18] sm:$0xff]
        %v469 = vld [vmem:[%s3 + $0x20] sm:$0xff]
        %v470 = vld [vmem:[%s3 + $0x28] sm:$0xff]
        %v471 = vld [vmem:[%s3 + $0x30] sm:$0xff]
        %v472 = vld [vmem:[%s3 + $0x38] sm:$0xff]
        %v473 = vld [vmem:[%s3 + $0x40] sm:$0xff]
        %v474 = vld [vmem:[%s3 + $0x48] sm:$0xff]
        %v475 = vld [vmem:[%s3 + $0x50] sm:$0xff]
        %v476 = vld [vmem:[%s3 + $0x58] sm:$0xff]
        %v477 = vld [vmem:[%s3 + $0x60] sm:$0xff]
        %v478 = vld [vmem:[%s3 + $0x68] sm:$0xff]
        %v479 = vld [vmem:[%s3 + $0x70] sm:$0xff]
        %v480 = vld [vmem:[%s3 + $0x78] sm:$0xff]
        %v481 = vld [vmem:[%s3 + $0x80] sm:$0xff]
        %v482 = vld [vmem:[%s3 + $0x88] sm:$0xff]
        %v483 = vld [vmem:[%s3 + $0x90] sm:$0xff]
        %v484 = vld [vmem:[%s3 + $0x98] sm:$0xff]
        %v485 = vld [vmem:[%s3 + $0xa0] sm:$0xff]
        %v486 = vld [vmem:[%s3 + $0xa8] sm:$0xff]
        %v487 = vld [vmem:[%s3 + $0xb0] sm:$0xff]
        %v488 = vld [vmem:[%s3 + $0xb8] sm:$0xff]
        %v489 = vld [vmem:[%s3 + $0xc0] sm:$0xff]
        %v490 = vld [vmem:[%s3 + $0xc8] sm:$0xff]
        %v491 = vld [vmem:[%s3 + $0xd0] sm:$0xff]
        %v492 = vld [vmem:[%s3 + $0xd8] sm:$0xff]
        %v493 = vld [vmem:[%s3 + $0xe0] sm:$0xff]
        %v494 = vld [vmem:[%s3 + $0xe8] sm:$0xff]
        %v495 = vld [vmem:[%s3 + $0xf0] sm:$0xff]
        %v496 = vld [vmem:[%s3 + $0xf8] sm:$0xff]
        %v497 = vld [vmem:[%s3 + $0x100] sm:$0xff]
        %v498 = vld [vmem:[%s3 + $0x108] sm:$0xff]
        %v499 = vld [vmem:[%s3 + $0x110] sm:$0xff]
        %v500 = vld [vmem:[%s3 + $0x118] sm:$0xff]
        %v501 = vld [vmem:[%s4] sm:$0xff]
        %v502 = vld [vmem:[%s4 + $0x8] sm:$0xff]
        %v503 = vld [vmem:[%s4 + $0x10] sm:$0xff]
        %v504 = vld [vmem:[%s4 + $0x18] sm:$0xff]
        %v505 = vld [vmem:[%s5] sm:$0x1]
        %v506 = vld [vmem:[%s6] sm:$0x1]
        %v507 = vld [vmem:[%s7] sm:$0x1]
        %v508 = vld [vmem:[%s8] sm:$0x1]
        %v509 = vld [vmem:[%s9] sm:$0x1]
        %v510 = vld [vmem:[%s10] sm:$0x1]
        %vm511 = vcmask 253952
        %512 = vst.msk [vmem:[#allocation2] sm:$0x1] %vm511, 0.0
        %513 = vst.msk [vmem:[#allocation2 + $0x18] sm:$0x1] %vm511, 0.0
        %514 = vst.msk [vmem:[#allocation2 + $0x30] sm:$0x1] %vm511, 0.0
        %515 = vst.msk [vmem:[#allocation2 + $0x48] sm:$0x1] %vm511, 0.0
        %516 = vst.msk [vmem:[#allocation2 + $0x60] sm:$0x1] %vm511, 0.0
        %517 = vst.msk [vmem:[#allocation2 + $0x78] sm:$0x1] %vm511, 0.0
        %518 = vst.msk [vmem:[#allocation2 + $0x90] sm:$0x1] %vm511, 0.0
        %519 = vst.msk [vmem:[#allocation2 + $0xa8] sm:$0x1] %vm511, 0.0
        %520 = vst.msk [vmem:[#allocation2 + $0xc0] sm:$0x1] %vm511, 0.0
        %521 = vst.msk [vmem:[#allocation2 + $0xd8] sm:$0x1] %vm511, 0.0
        %522 = vst.msk [vmem:[#allocation2 + $0x11] sm:$0x1] %vm511, 0.0
        %523 = vst.msk [vmem:[#allocation2 + $0x29] sm:$0x1] %vm511, 0.0
        %524 = vst.msk [vmem:[#allocation2 + $0x41] sm:$0x1] %vm511, 0.0
        %525 = vst.msk [vmem:[#allocation2 + $0x59] sm:$0x1] %vm511, 0.0
        %526 = vst.msk [vmem:[#allocation2 + $0x71] sm:$0x1] %vm511, 0.0
        %527 = vst.msk [vmem:[#allocation2 + $0x89] sm:$0x1] %vm511, 0.0
        %528 = vst.msk [vmem:[#allocation2 + $0xa1] sm:$0x1] %vm511, 0.0
        %529 = vst.msk [vmem:[#allocation2 + $0xb9] sm:$0x1] %vm511, 0.0
        %530 = vst.msk [vmem:[#allocation2 + $0xd1] sm:$0x1] %vm511, 0.0
        %531 = vst.msk [vmem:[#allocation2 + $0xe9] sm:$0x1] %vm511, 0.0
        %v532 = vld [vmem:[%s362] sm:$0xff]
        %v533 = vld [vmem:[%s362 + $0x8] sm:$0xff]
        %v534 = vld [vmem:[%s362 + $0x10] sm:$0xff]
        %v535 = vld [vmem:[%s362 + $0x18] sm:$0xff]
        %v536 = vld [vmem:[%s362 + $0x20] sm:$0xff]
        %v537 = vld [vmem:[%s362 + $0x28] sm:$0xff]
        %v538 = vld [vmem:[%s362 + $0x30] sm:$0xff]
        %v539 = vld [vmem:[%s362 + $0x38] sm:$0xff]
        %v540 = vld [vmem:[%s362 + $0x40] sm:$0xff]
        %v541 = vld [vmem:[%s362 + $0x48] sm:$0xff]
        %v542 = vld [vmem:[%s362 + $0x50] sm:$0xff]
        %v543 = vld [vmem:[%s362 + $0x58] sm:$0xff]
        %v544 = vld [vmem:[%s362 + $0x60] sm:$0xff]
        %v545 = vld [vmem:[%s362 + $0x68] sm:$0xff]
        %v546 = vld [vmem:[%s362 + $0x70] sm:$0xff]
        %v547 = vld [vmem:[%s362 + $0x78] sm:$0xff]
        %548 = vmatpush.msra.mxu0 %v464
        %549 = vmatpush.msra.mxu0 %v463
        %550 = vmatpush.msra.mxu0 %v462
        %551 = vmatpush.msra.mxu0 %v461
        %552 = vmatpush.msra.mxu0 %v460
        %553 = vmatpush.msra.mxu0 %v459
        %554 = vmatpush.msra.mxu0 %v458
        %555 = vmatpush.msra.mxu0 %v457
        %556 = vmatpush.msra.mxu0 %v456
        %557 = vmatpush.msra.mxu0 %v455
        %558 = vmatpush.msra.mxu0 %v454
        %559 = vmatpush.msra.mxu0 %v453
        %560 = vmatpush.msra.mxu0 %v452
        %561 = vmatpush.msra.mxu0 %v451
        %562 = vmatpush.msra.mxu0 %v450
        %563 = vmatpush.msra.mxu0 %v449
        %564 = vmatmul.f32.gmra.mxu0 %v532
        %v565 = vpop.f32.mrf.mxu0
        %v566 = vadd.f32 0.0, %v565
        %567 = vmatmul.f32.gmra.mxu0 %v533
        %v568 = vpop.f32.mrf.mxu0
        %v569 = vadd.f32 0.0, %v568
        %570 = vmatmul.f32.gmra.mxu0 %v534
        %v571 = vpop.f32.mrf.mxu0
        %v572 = vadd.f32 0.0, %v571
        %573 = vmatmul.f32.gmra.mxu0 %v535
        %v574 = vpop.f32.mrf.mxu0
        %v575 = vadd.f32 0.0, %v574
        %576 = vmatmul.f32.gmra.mxu0 %v536
        %v577 = vpop.f32.mrf.mxu0
        %v578 = vadd.f32 0.0, %v577
        %579 = vmatmul.f32.gmra.mxu0 %v537
        %v580 = vpop.f32.mrf.mxu0
        %v581 = vadd.f32 0.0, %v580
        %582 = vmatmul.f32.gmra.mxu0 %v538
        %v583 = vpop.f32.mrf.mxu0
        %v584 = vadd.f32 0.0, %v583
        %585 = vmatmul.f32.gmra.mxu0 %v539
        %v586 = vpop.f32.mrf.mxu0
        %v587 = vadd.f32 0.0, %v586
        %588 = vmatmul.f32.gmra.mxu0 %v540
        %v589 = vpop.f32.mrf.mxu0
        %v590 = vadd.f32 0.0, %v589
        %591 = vmatmul.f32.gmra.mxu0 %v541
        %v592 = vpop.f32.mrf.mxu0
        %v593 = vadd.f32 0.0, %v592
        %594 = vmatmul.f32.gmra.mxu0 %v542
        %v595 = vpop.f32.mrf.mxu0
        %v596 = vadd.f32 0.0, %v595
        %597 = vmatmul.f32.gmra.mxu0 %v543
        %v598 = vpop.f32.mrf.mxu0
        %v599 = vadd.f32 0.0, %v598
        %600 = vmatmul.f32.gmra.mxu0 %v544
        %v601 = vpop.f32.mrf.mxu0
        %v602 = vadd.f32 0.0, %v601
        %603 = vmatmul.f32.gmra.mxu0 %v545
        %v604 = vpop.f32.mrf.mxu0
        %v605 = vadd.f32 0.0, %v604
        %606 = vmatmul.f32.gmra.mxu0 %v546
        %v607 = vpop.f32.mrf.mxu0
        %v608 = vadd.f32 0.0, %v607
        %609 = vmatmul.f32.gmra.mxu0 %v547
        %v610 = vpop.f32.mrf.mxu0
        %v611 = vadd.f32 0.0, %v610
        %612 = vdwg.mxu0
        %v614 = vperm.slane %v505, 0
        %v616 = vmul.f32 %v566, %v614
        %v617 = vmul.f32 %v569, %v614
        %v618 = vmul.f32 %v572, %v614
        %v619 = vmul.f32 %v575, %v614
        %v620 = vmul.f32 %v578, %v614
        %v621 = vmul.f32 %v581, %v614
        %v622 = vmul.f32 %v584, %v614
        %v623 = vmul.f32 %v587, %v614
        %v624 = vmul.f32 %v590, %v614
        %v625 = vmul.f32 %v593, %v614
        %v626 = vmul.f32 %v596, %v614
        %v627 = vmul.f32 %v599, %v614
        %v628 = vmul.f32 %v602, %v614
        %v629 = vmul.f32 %v605, %v614
        %v630 = vmul.f32 %v608, %v614
        %v631 = vmul.f32 %v611, %v614
        %v633 = vperm.slane %v506, 0
        %v635 = vadd.f32 %v616, %v633
        %v636 = vadd.f32 %v617, %v633
        %v637 = vadd.f32 %v618, %v633
        %v638 = vadd.f32 %v619, %v633
        %v639 = vadd.f32 %v620, %v633
        %v640 = vadd.f32 %v621, %v633
        %v641 = vadd.f32 %v622, %v633
        %v642 = vadd.f32 %v623, %v633
        %v643 = vadd.f32 %v624, %v633
        %v644 = vadd.f32 %v625, %v633
        %v645 = vadd.f32 %v626, %v633
        %v646 = vadd.f32 %v627, %v633
        %v647 = vadd.f32 %v628, %v633
        %v648 = vadd.f32 %v629, %v633
        %v649 = vadd.f32 %v630, %v633
        %v650 = vadd.f32 %v631, %v633
        %v651 = vmax.f32 %v635, 0.0
        %v652 = vmax.f32 %v636, 0.0
        %v653 = vmax.f32 %v637, 0.0
        %v654 = vmax.f32 %v638, 0.0
        %v655 = vmax.f32 %v639, 0.0
        %v656 = vmax.f32 %v640, 0.0
        %v657 = vmax.f32 %v641, 0.0
        %v658 = vmax.f32 %v642, 0.0
        %v659 = vmax.f32 %v643, 0.0
        %v660 = vmax.f32 %v644, 0.0
        %v661 = vmax.f32 %v645, 0.0
        %v662 = vmax.f32 %v646, 0.0
        %v663 = vmax.f32 %v647, 0.0
        %v664 = vmax.f32 %v648, 0.0
        %v665 = vmax.f32 %v649, 0.0
        %v666 = vmax.f32 %v650, 0.0
        %s667 = scalar_lea.vmem [#allocation2], 24
        %vm668 = vcmask 261120
        %669 = vst.msk [vmem:[%s667 + $0x1] sm:$0xff] %vm668, %v651
        %670 = vst.msk [vmem:[%s667 + $0x9] sm:$0xff] %vm668, %v652
        %671 = vst.msk [vmem:[%s667 + $0x19] sm:$0xff] %vm668, %v653
        %672 = vst.msk [vmem:[%s667 + $0x21] sm:$0xff] %vm668, %v654
        %673 = vst.msk [vmem:[%s667 + $0x31] sm:$0xff] %vm668, %v655
        %674 = vst.msk [vmem:[%s667 + $0x39] sm:$0xff] %vm668, %v656
        %675 = vst.msk [vmem:[%s667 + $0x49] sm:$0xff] %vm668, %v657
        %676 = vst.msk [vmem:[%s667 + $0x51] sm:$0xff] %vm668, %v658
        %677 = vst.msk [vmem:[%s667 + $0x61] sm:$0xff] %vm668, %v659
        %678 = vst.msk [vmem:[%s667 + $0x69] sm:$0xff] %vm668, %v660
        %679 = vst.msk [vmem:[%s667 + $0x79] sm:$0xff] %vm668, %v661
        %680 = vst.msk [vmem:[%s667 + $0x81] sm:$0xff] %vm668, %v662
        %681 = vst.msk [vmem:[%s667 + $0x91] sm:$0xff] %vm668, %v663
        %682 = vst.msk [vmem:[%s667 + $0x99] sm:$0xff] %vm668, %v664
        %683 = vst.msk [vmem:[%s667 + $0xa9] sm:$0xff] %vm668, %v665
        %684 = vst.msk [vmem:[%s667 + $0xb1] sm:$0xff] %vm668, %v666
        // Predicated region
        $region81: #{tpu_custom_call.1} parent=59 // pred_check
          %p685 = pneg %p403
        $region82: #{tpu_custom_call.1} parent=59 // pred_check_branch
          %687 = sbr.rel (%p685) target = $region84
        $region83: #{tpu_custom_call.1} parent=59 // pred_region
          %s688 = smul.u32 16, 1
          %s689 = sshll.u32 %s688, 4
          %690 = dma.done [#allocation4], %s689
          %v691 = vld [vmem:[#allocation3] sm:$0xff]
          %v692 = vld [vmem:[#allocation3 + $0x8] sm:$0xff]
          %693 = vmatpush.msra.mxu0 %v464
          %694 = vmatpush.msra.mxu0 %v463
          %695 = vmatpush.msra.mxu0 %v462
          %696 = vmatpush.msra.mxu0 %v461
          %697 = vmatpush.msra.mxu0 %v460
          %698 = vmatpush.msra.mxu0 %v459
          %699 = vmatpush.msra.mxu0 %v458
          %700 = vmatpush.msra.mxu0 %v457
          %701 = vmatpush.msra.mxu0 %v456
          %702 = vmatpush.msra.mxu0 %v455
          %703 = vmatpush.msra.mxu0 %v454
          %704 = vmatpush.msra.mxu0 %v453
          %705 = vmatpush.msra.mxu0 %v452
          %706 = vmatpush.msra.mxu0 %v451
          %707 = vmatpush.msra.mxu0 %v450
          %708 = vmatpush.msra.mxu0 %v449
          %709 = vmatmul.f32.gmra.mxu0 %v691
          %v710 = vpop.f32.mrf.mxu0
          %v711 = vadd.f32 0.0, %v710
          %712 = vmatmul.f32.gmra.mxu0 %v692
          %v713 = vpop.f32.mrf.mxu0
          %v714 = vadd.f32 0.0, %v713
          %715 = vdwg.mxu0
          %v716 = vmul.f32 %v711, %v614
          %v717 = vmul.f32 %v714, %v614
          %v718 = vadd.f32 %v716, %v633
          %v719 = vadd.f32 %v717, %v633
          %v720 = vmax.f32 %v718, 0.0
          %v721 = vmax.f32 %v719, 0.0
          %722 = vst.msk [vmem:[#allocation2 + $0x1] sm:$0xff] %vm668, %v720
          %723 = vst.msk [vmem:[#allocation2 + $0x9] sm:$0xff] %vm668, %v721
        $region84: #{tpu_custom_call.1} parent=59 // pred_fallthru
          _
        %p724 = scmp.eq.s32.totalorder %s33, 0
        // Predicated region
        $region85: #{tpu_custom_call.1} parent=59 // pred_check
          %p725 = pneg %p724
        $region86: #{tpu_custom_call.1} parent=59 // pred_check_branch
          %727 = sbr.rel (%p725) target = $region88
        $region87: #{tpu_custom_call.1} parent=59 // pred_region
          %728 = vst.msk [vmem:[#allocation2] sm:$0xff] %vm668, 0.0
          %729 = vst.msk [vmem:[#allocation2 + $0x8] sm:$0xff] %vm668, 0.0
          %730 = vst.msk [vmem:[#allocation2 + $0x10] sm:$0xff] %vm668, 0.0
        $region88: #{tpu_custom_call.1} parent=59 // pred_fallthru
          _
        // Predicated region
        $region89: #{tpu_custom_call.1} parent=59 // pred_check
          %p731 = pneg %p425
        $region90: #{tpu_custom_call.1} parent=59 // pred_check_branch
          %733 = sbr.rel (%p731) target = $region92
        $region91: #{tpu_custom_call.1} parent=59 // pred_region
          %s734 = scalar_lea.vmem [#allocation3], 16
          %s735 = scalar_lea.sflag [#allocation4], 1
          %s736 = smul.u32 16, 1
          %s737 = sshll.u32 %s736, 4
          %738 = dma.done %s735, %s737
          %v739 = vld [vmem:[%s734] sm:$0xff]
          %v740 = vld [vmem:[%s734 + $0x8] sm:$0xff]
          %741 = vmatpush.msra.mxu0 %v464
          %742 = vmatpush.msra.mxu0 %v463
          %743 = vmatpush.msra.mxu0 %v462
          %744 = vmatpush.msra.mxu0 %v461
          %745 = vmatpush.msra.mxu0 %v460
          %746 = vmatpush.msra.mxu0 %v459
          %747 = vmatpush.msra.mxu0 %v458
          %748 = vmatpush.msra.mxu0 %v457
          %749 = vmatpush.msra.mxu0 %v456
          %750 = vmatpush.msra.mxu0 %v455
          %751 = vmatpush.msra.mxu0 %v454
          %752 = vmatpush.msra.mxu0 %v453
          %753 = vmatpush.msra.mxu0 %v452
          %754 = vmatpush.msra.mxu0 %v451
          %755 = vmatpush.msra.mxu0 %v450
          %756 = vmatpush.msra.mxu0 %v449
          %757 = vmatmul.f32.gmra.mxu0 %v739
          %v758 = vpop.f32.mrf.mxu0
          %v759 = vadd.f32 0.0, %v758
          %760 = vmatmul.f32.gmra.mxu0 %v740
          %v761 = vpop.f32.mrf.mxu0
          %v762 = vadd.f32 0.0, %v761
          %763 = vdwg.mxu0
          %v764 = vmul.f32 %v759, %v614
          %v765 = vmul.f32 %v762, %v614
          %v766 = vadd.f32 %v764, %v633
          %v767 = vadd.f32 %v765, %v633
          %v768 = vmax.f32 %v766, 0.0
          %v769 = vmax.f32 %v767, 0.0
          %s770 = scalar_lea.vmem [#allocation2], 216
          %771 = vst.msk [vmem:[%s770 + $0x1] sm:$0xff] %vm668, %v768
          %772 = vst.msk [vmem:[%s770 + $0x9] sm:$0xff] %vm668, %v769
        $region92: #{tpu_custom_call.1} parent=59 // pred_fallthru
          _
        %p773 = scmp.eq.s32.totalorder %s33, 2
        // Predicated region
        $region93: #{tpu_custom_call.1} parent=59 // pred_check
          %p774 = pneg %p773
        $region94: #{tpu_custom_call.1} parent=59 // pred_check_branch
          %776 = sbr.rel (%p774) target = $region96
        $region95: #{tpu_custom_call.1} parent=59 // pred_region
          %s777 = scalar_lea.vmem [#allocation2], 216
          %778 = vst.msk [vmem:[%s777] sm:$0xff] %vm668, 0.0
          %779 = vst.msk [vmem:[%s777 + $0x8] sm:$0xff] %vm668, 0.0
          %780 = vst.msk [vmem:[%s777 + $0x10] sm:$0xff] %vm668, 0.0
        $region96: #{tpu_custom_call.1} parent=59 // pred_fallthru
          _
        %v781 = vld [vmem:[#allocation2] sm:$0xff]
        %v782 = vld [vmem:[#allocation2 + $0x8] sm:$0xff]
        %v783 = vld [vmem:[#allocation2 + $0x18] sm:$0xff]
        %v784 = vld [vmem:[#allocation2 + $0x20] sm:$0xff]
        %v785 = vld [vmem:[#allocation2 + $0x30] sm:$0xff]
        %v786 = vld [vmem:[#allocation2 + $0x38] sm:$0xff]
        %v787 = vld [vmem:[#allocation2 + $0x48] sm:$0xff]
        %v788 = vld [vmem:[#allocation2 + $0x50] sm:$0xff]
        %v789 = vld [vmem:[#allocation2 + $0x60] sm:$0xff]
        %v790 = vld [vmem:[#allocation2 + $0x68] sm:$0xff]
        %v791 = vld [vmem:[#allocation2 + $0x78] sm:$0xff]
        %v792 = vld [vmem:[#allocation2 + $0x80] sm:$0xff]
        %v793 = vld [vmem:[#allocation2 + $0x90] sm:$0xff]
        %v794 = vld [vmem:[#allocation2 + $0x98] sm:$0xff]
        %v795 = vld [vmem:[#allocation2 + $0xa8] sm:$0xff]
        %v796 = vld [vmem:[#allocation2 + $0xb0] sm:$0xff]
        %v797 = vld [vmem:[#allocation2 + $0x1] sm:$0xff]
        %v798 = vld [vmem:[#allocation2 + $0x9] sm:$0xff]
        %v799 = vld [vmem:[#allocation2 + $0x19] sm:$0xff]
        %v800 = vld [vmem:[#allocation2 + $0x21] sm:$0xff]
        %v801 = vld [vmem:[#allocation2 + $0x31] sm:$0xff]
        %v802 = vld [vmem:[#allocation2 + $0x39] sm:$0xff]
        %v803 = vld [vmem:[#allocation2 + $0x49] sm:$0xff]
        %v804 = vld [vmem:[#allocation2 + $0x51] sm:$0xff]
        %v805 = vld [vmem:[#allocation2 + $0x61] sm:$0xff]
        %v806 = vld [vmem:[#allocation2 + $0x69] sm:$0xff]
        %v807 = vld [vmem:[#allocation2 + $0x79] sm:$0xff]
        %v808 = vld [vmem:[#allocation2 + $0x81] sm:$0xff]
        %v809 = vld [vmem:[#allocation2 + $0x91] sm:$0xff]
        %v810 = vld [vmem:[#allocation2 + $0x99] sm:$0xff]
        %v811 = vld [vmem:[#allocation2 + $0xa9] sm:$0xff]
        %v812 = vld [vmem:[#allocation2 + $0xb1] sm:$0xff]
        %v813 = vld [vmem:[#allocation2 + $0x2] sm:$0xff]
        %v814 = vld [vmem:[#allocation2 + $0xa] sm:$0xff]
        %v815 = vld [vmem:[#allocation2 + $0x1a] sm:$0xff]
        %v816 = vld [vmem:[#allocation2 + $0x22] sm:$0xff]
        %v817 = vld [vmem:[#allocation2 + $0x32] sm:$0xff]
        %v818 = vld [vmem:[#allocation2 + $0x3a] sm:$0xff]
        %v819 = vld [vmem:[#allocation2 + $0x4a] sm:$0xff]
        %v820 = vld [vmem:[#allocation2 + $0x52] sm:$0xff]
        %v821 = vld [vmem:[#allocation2 + $0x62] sm:$0xff]
        %v822 = vld [vmem:[#allocation2 + $0x6a] sm:$0xff]
        %v823 = vld [vmem:[#allocation2 + $0x7a] sm:$0xff]
        %v824 = vld [vmem:[#allocation2 + $0x82] sm:$0xff]
        %v825 = vld [vmem:[#allocation2 + $0x92] sm:$0xff]
        %v826 = vld [vmem:[#allocation2 + $0x9a] sm:$0xff]
        %v827 = vld [vmem:[#allocation2 + $0xaa] sm:$0xff]
        %v828 = vld [vmem:[#allocation2 + $0xb2] sm:$0xff]
        %v829 = vld [vmem:[%s667] sm:$0xff]
        %v830 = vld [vmem:[%s667 + $0x8] sm:$0xff]
        %v831 = vld [vmem:[%s667 + $0x18] sm:$0xff]
        %v832 = vld [vmem:[%s667 + $0x20] sm:$0xff]
        %v833 = vld [vmem:[%s667 + $0x30] sm:$0xff]
        %v834 = vld [vmem:[%s667 + $0x38] sm:$0xff]
        %v835 = vld [vmem:[%s667 + $0x48] sm:$0xff]
        %v836 = vld [vmem:[%s667 + $0x50] sm:$0xff]
        %v837 = vld [vmem:[%s667 + $0x60] sm:$0xff]
        %v838 = vld [vmem:[%s667 + $0x68] sm:$0xff]
        %v839 = vld [vmem:[%s667 + $0x78] sm:$0xff]
        %v840 = vld [vmem:[%s667 + $0x80] sm:$0xff]
        %v841 = vld [vmem:[%s667 + $0x90] sm:$0xff]
        %v842 = vld [vmem:[%s667 + $0x98] sm:$0xff]
        %v843 = vld [vmem:[%s667 + $0xa8] sm:$0xff]
        %v844 = vld [vmem:[%s667 + $0xb0] sm:$0xff]
        %v845 = vld [vmem:[%s667 + $0x1] sm:$0xff]
        %v846 = vld [vmem:[%s667 + $0x9] sm:$0xff]
        %v847 = vld [vmem:[%s667 + $0x19] sm:$0xff]
        %v848 = vld [vmem:[%s667 + $0x21] sm:$0xff]
        %v849 = vld [vmem:[%s667 + $0x31] sm:$0xff]
        %v850 = vld [vmem:[%s667 + $0x39] sm:$0xff]
        %v851 = vld [vmem:[%s667 + $0x49] sm:$0xff]
        %v852 = vld [vmem:[%s667 + $0x51] sm:$0xff]
        %v853 = vld [vmem:[%s667 + $0x61] sm:$0xff]
        %v854 = vld [vmem:[%s667 + $0x69] sm:$0xff]
        %v855 = vld [vmem:[%s667 + $0x79] sm:$0xff]
        %v856 = vld [vmem:[%s667 + $0x81] sm:$0xff]
        %v857 = vld [vmem:[%s667 + $0x91] sm:$0xff]
        %v858 = vld [vmem:[%s667 + $0x99] sm:$0xff]
        %v859 = vld [vmem:[%s667 + $0xa9] sm:$0xff]
        %v860 = vld [vmem:[%s667 + $0xb1] sm:$0xff]
        %v861 = vld [vmem:[%s667 + $0x2] sm:$0xff]
        %v862 = vld [vmem:[%s667 + $0xa] sm:$0xff]
        %v863 = vld [vmem:[%s667 + $0x1a] sm:$0xff]
        %v864 = vld [vmem:[%s667 + $0x22] sm:$0xff]
        %v865 = vld [vmem:[%s667 + $0x32] sm:$0xff]
        %v866 = vld [vmem:[%s667 + $0x3a] sm:$0xff]
        %v867 = vld [vmem:[%s667 + $0x4a] sm:$0xff]
        %v868 = vld [vmem:[%s667 + $0x52] sm:$0xff]
        %v869 = vld [vmem:[%s667 + $0x62] sm:$0xff]
        %v870 = vld [vmem:[%s667 + $0x6a] sm:$0xff]
        %v871 = vld [vmem:[%s667 + $0x7a] sm:$0xff]
        %v872 = vld [vmem:[%s667 + $0x82] sm:$0xff]
        %v873 = vld [vmem:[%s667 + $0x92] sm:$0xff]
        %v874 = vld [vmem:[%s667 + $0x9a] sm:$0xff]
        %v875 = vld [vmem:[%s667 + $0xaa] sm:$0xff]
        %v876 = vld [vmem:[%s667 + $0xb2] sm:$0xff]
        %s877 = scalar_lea.vmem [#allocation2], 48
        %v878 = vld [vmem:[%s877] sm:$0xff]
        %v879 = vld [vmem:[%s877 + $0x8] sm:$0xff]
        %v880 = vld [vmem:[%s877 + $0x18] sm:$0xff]
        %v881 = vld [vmem:[%s877 + $0x20] sm:$0xff]
        %v882 = vld [vmem:[%s877 + $0x30] sm:$0xff]
        %v883 = vld [vmem:[%s877 + $0x38] sm:$0xff]
        %v884 = vld [vmem:[%s877 + $0x48] sm:$0xff]
        %v885 = vld [vmem:[%s877 + $0x50] sm:$0xff]
        %v886 = vld [vmem:[%s877 + $0x60] sm:$0xff]
        %v887 = vld [vmem:[%s877 + $0x68] sm:$0xff]
        %v888 = vld [vmem:[%s877 + $0x78] sm:$0xff]
        %v889 = vld [vmem:[%s877 + $0x80] sm:$0xff]
        %v890 = vld [vmem:[%s877 + $0x90] sm:$0xff]
        %v891 = vld [vmem:[%s877 + $0x98] sm:$0xff]
        %v892 = vld [vmem:[%s877 + $0xa8] sm:$0xff]
        %v893 = vld [vmem:[%s877 + $0xb0] sm:$0xff]
        %v894 = vld [vmem:[%s877 + $0x1] sm:$0xff]
        %v895 = vld [vmem:[%s877 + $0x9] sm:$0xff]
        %v896 = vld [vmem:[%s877 + $0x19] sm:$0xff]
        %v897 = vld [vmem:[%s877 + $0x21] sm:$0xff]
        %v898 = vld [vmem:[%s877 + $0x31] sm:$0xff]
        %v899 = vld [vmem:[%s877 + $0x39] sm:$0xff]
        %v900 = vld [vmem:[%s877 + $0x49] sm:$0xff]
        %v901 = vld [vmem:[%s877 + $0x51] sm:$0xff]
        %v902 = vld [vmem:[%s877 + $0x61] sm:$0xff]
        %v903 = vld [vmem:[%s877 + $0x69] sm:$0xff]
        %v904 = vld [vmem:[%s877 + $0x79] sm:$0xff]
        %v905 = vld [vmem:[%s877 + $0x81] sm:$0xff]
        %v906 = vld [vmem:[%s877 + $0x91] sm:$0xff]
        %v907 = vld [vmem:[%s877 + $0x99] sm:$0xff]
        %v908 = vld [vmem:[%s877 + $0xa9] sm:$0xff]
        %v909 = vld [vmem:[%s877 + $0xb1] sm:$0xff]
        %v910 = vld [vmem:[%s877 + $0x2] sm:$0xff]
        %v911 = vld [vmem:[%s877 + $0xa] sm:$0xff]
        %v912 = vld [vmem:[%s877 + $0x1a] sm:$0xff]
        %v913 = vld [vmem:[%s877 + $0x22] sm:$0xff]
        %v914 = vld [vmem:[%s877 + $0x32] sm:$0xff]
        %v915 = vld [vmem:[%s877 + $0x3a] sm:$0xff]
        %v916 = vld [vmem:[%s877 + $0x4a] sm:$0xff]
        %v917 = vld [vmem:[%s877 + $0x52] sm:$0xff]
        %v918 = vld [vmem:[%s877 + $0x62] sm:$0xff]
        %v919 = vld [vmem:[%s877 + $0x6a] sm:$0xff]
        %v920 = vld [vmem:[%s877 + $0x7a] sm:$0xff]
        %v921 = vld [vmem:[%s877 + $0x82] sm:$0xff]
        %v922 = vld [vmem:[%s877 + $0x92] sm:$0xff]
        %v923 = vld [vmem:[%s877 + $0x9a] sm:$0xff]
        %v924 = vld [vmem:[%s877 + $0xaa] sm:$0xff]
        %v925 = vld [vmem:[%s877 + $0xb2] sm:$0xff]
        %942 = vrot.lane.b32.xlu0 %v797, 32
        %v943 = vpop.permute.xlu0 %942
        %944 = vrot.lane.b32.xlu0 %v798, 32
        %v945 = vpop.permute.xlu0 %944
        %946 = vrot.lane.b32.xlu0 %v799, 32
        %v947 = vpop.permute.xlu0 %946
        %948 = vrot.lane.b32.xlu0 %v800, 32
        %v949 = vpop.permute.xlu0 %948
        %950 = vrot.lane.b32.xlu0 %v801, 32
        %v951 = vpop.permute.xlu0 %950
        %952 = vrot.lane.b32.xlu0 %v802, 32
        %v953 = vpop.permute.xlu0 %952
        %954 = vrot.lane.b32.xlu0 %v803, 32
        %v955 = vpop.permute.xlu0 %954
        %956 = vrot.lane.b32.xlu0 %v804, 32
        %v957 = vpop.permute.xlu0 %956
        %958 = vrot.lane.b32.xlu0 %v805, 32
        %v959 = vpop.permute.xlu0 %958
        %960 = vrot.lane.b32.xlu0 %v806, 32
        %v961 = vpop.permute.xlu0 %960
        %962 = vrot.lane.b32.xlu0 %v807, 32
        %v963 = vpop.permute.xlu0 %962
        %964 = vrot.lane.b32.xlu0 %v808, 32
        %v965 = vpop.permute.xlu0 %964
        %966 = vrot.lane.b32.xlu0 %v809, 32
        %v967 = vpop.permute.xlu0 %966
        %968 = vrot.lane.b32.xlu0 %v810, 32
        %v969 = vpop.permute.xlu0 %968
        %970 = vrot.lane.b32.xlu0 %v811, 32
        %v971 = vpop.permute.xlu0 %970
        %972 = vrot.lane.b32.xlu0 %v812, 32
        %v973 = vpop.permute.xlu0 %972
        %1006 = vrot.lane.b32.xlu0 %v813, 64
        %v1007 = vpop.permute.xlu0 %1006
        %1008 = vrot.lane.b32.xlu0 %v814, 64
        %v1009 = vpop.permute.xlu0 %1008
        %1010 = vrot.lane.b32.xlu0 %v815, 64
        %v1011 = vpop.permute.xlu0 %1010
        %1012 = vrot.lane.b32.xlu0 %v816, 64
        %v1013 = vpop.permute.xlu0 %1012
        %1014 = vrot.lane.b32.xlu0 %v817, 64
        %v1015 = vpop.permute.xlu0 %1014
        %1016 = vrot.lane.b32.xlu0 %v818, 64
        %v1017 = vpop.permute.xlu0 %1016
        %1018 = vrot.lane.b32.xlu0 %v819, 64
        %v1019 = vpop.permute.xlu0 %1018
        %1020 = vrot.lane.b32.xlu0 %v820, 64
        %v1021 = vpop.permute.xlu0 %1020
        %1022 = vrot.lane.b32.xlu0 %v821, 64
        %v1023 = vpop.permute.xlu0 %1022
        %1024 = vrot.lane.b32.xlu0 %v822, 64
        %v1025 = vpop.permute.xlu0 %1024
        %1026 = vrot.lane.b32.xlu0 %v823, 64
        %v1027 = vpop.permute.xlu0 %1026
        %1028 = vrot.lane.b32.xlu0 %v824, 64
        %v1029 = vpop.permute.xlu0 %1028
        %1030 = vrot.lane.b32.xlu0 %v825, 64
        %v1031 = vpop.permute.xlu0 %1030
        %1032 = vrot.lane.b32.xlu0 %v826, 64
        %v1033 = vpop.permute.xlu0 %1032
        %1034 = vrot.lane.b32.xlu0 %v827, 64
        %v1035 = vpop.permute.xlu0 %1034
        %1036 = vrot.lane.b32.xlu0 %v828, 64
        %v1037 = vpop.permute.xlu0 %1036
        %1070 = vrot.lane.b32.xlu0 %v829, 96
        %v1071 = vpop.permute.xlu0 %1070
        %1072 = vrot.lane.b32.xlu0 %v830, 96
        %v1073 = vpop.permute.xlu0 %1072
        %1074 = vrot.lane.b32.xlu0 %v831, 96
        %v1075 = vpop.permute.xlu0 %1074
        %1076 = vrot.lane.b32.xlu0 %v832, 96
        %v1077 = vpop.permute.xlu0 %1076
        %1078 = vrot.lane.b32.xlu0 %v833, 96
        %v1079 = vpop.permute.xlu0 %1078
        %1080 = vrot.lane.b32.xlu0 %v834, 96
        %v1081 = vpop.permute.xlu0 %1080
        %1082 = vrot.lane.b32.xlu0 %v835, 96
        %v1083 = vpop.permute.xlu0 %1082
        %1084 = vrot.lane.b32.xlu0 %v836, 96
        %v1085 = vpop.permute.xlu0 %1084
        %1086 = vrot.lane.b32.xlu0 %v837, 96
        %v1087 = vpop.permute.xlu0 %1086
        %1088 = vrot.lane.b32.xlu0 %v838, 96
        %v1089 = vpop.permute.xlu0 %1088
        %1090 = vrot.lane.b32.xlu0 %v839, 96
        %v1091 = vpop.permute.xlu0 %1090
        %1092 = vrot.lane.b32.xlu0 %v840, 96
        %v1093 = vpop.permute.xlu0 %1092
        %1094 = vrot.lane.b32.xlu0 %v841, 96
        %v1095 = vpop.permute.xlu0 %1094
        %1096 = vrot.lane.b32.xlu0 %v842, 96
        %v1097 = vpop.permute.xlu0 %1096
        %1098 = vrot.lane.b32.xlu0 %v843, 96
        %v1099 = vpop.permute.xlu0 %1098
        %1100 = vrot.lane.b32.xlu0 %v844, 96
        %v1101 = vpop.permute.xlu0 %1100
        %1134 = vrot.lane.b32.xlu0 %v861, 32
        %v1135 = vpop.permute.xlu0 %1134
        %1136 = vrot.lane.b32.xlu0 %v862, 32
        %v1137 = vpop.permute.xlu0 %1136
        %1138 = vrot.lane.b32.xlu0 %v863, 32
        %v1139 = vpop.permute.xlu0 %1138
        %1140 = vrot.lane.b32.xlu0 %v864, 32
        %v1141 = vpop.permute.xlu0 %1140
        %1142 = vrot.lane.b32.xlu0 %v865, 32
        %v1143 = vpop.permute.xlu0 %1142
        %1144 = vrot.lane.b32.xlu0 %v866, 32
        %v1145 = vpop.permute.xlu0 %1144
        %1146 = vrot.lane.b32.xlu0 %v867, 32
        %v1147 = vpop.permute.xlu0 %1146
        %1148 = vrot.lane.b32.xlu0 %v868, 32
        %v1149 = vpop.permute.xlu0 %1148
        %1150 = vrot.lane.b32.xlu0 %v869, 32
        %v1151 = vpop.permute.xlu0 %1150
        %1152 = vrot.lane.b32.xlu0 %v870, 32
        %v1153 = vpop.permute.xlu0 %1152
        %1154 = vrot.lane.b32.xlu0 %v871, 32
        %v1155 = vpop.permute.xlu0 %1154
        %1156 = vrot.lane.b32.xlu0 %v872, 32
        %v1157 = vpop.permute.xlu0 %1156
        %1158 = vrot.lane.b32.xlu0 %v873, 32
        %v1159 = vpop.permute.xlu0 %1158
        %1160 = vrot.lane.b32.xlu0 %v874, 32
        %v1161 = vpop.permute.xlu0 %1160
        %1162 = vrot.lane.b32.xlu0 %v875, 32
        %v1163 = vpop.permute.xlu0 %1162
        %1164 = vrot.lane.b32.xlu0 %v876, 32
        %v1165 = vpop.permute.xlu0 %1164
        %1198 = vrot.lane.b32.xlu0 %v878, 64
        %v1199 = vpop.permute.xlu0 %1198
        %1200 = vrot.lane.b32.xlu0 %v879, 64
        %v1201 = vpop.permute.xlu0 %1200
        %1202 = vrot.lane.b32.xlu0 %v880, 64
        %v1203 = vpop.permute.xlu0 %1202
        %1204 = vrot.lane.b32.xlu0 %v881, 64
        %v1205 = vpop.permute.xlu0 %1204
        %1206 = vrot.lane.b32.xlu0 %v882, 64
        %v1207 = vpop.permute.xlu0 %1206
        %1208 = vrot.lane.b32.xlu0 %v883, 64
        %v1209 = vpop.permute.xlu0 %1208
        %1210 = vrot.lane.b32.xlu0 %v884, 64
        %v1211 = vpop.permute.xlu0 %1210
        %1212 = vrot.lane.b32.xlu0 %v885, 64
        %v1213 = vpop.permute.xlu0 %1212
        %1214 = vrot.lane.b32.xlu0 %v886, 64
        %v1215 = vpop.permute.xlu0 %1214
        %1216 = vrot.lane.b32.xlu0 %v887, 64
        %v1217 = vpop.permute.xlu0 %1216
        %1218 = vrot.lane.b32.xlu0 %v888, 64
        %v1219 = vpop.permute.xlu0 %1218
        %1220 = vrot.lane.b32.xlu0 %v889, 64
        %v1221 = vpop.permute.xlu0 %1220
        %1222 = vrot.lane.b32.xlu0 %v890, 64
        %v1223 = vpop.permute.xlu0 %1222
        %1224 = vrot.lane.b32.xlu0 %v891, 64
        %v1225 = vpop.permute.xlu0 %1224
        %1226 = vrot.lane.b32.xlu0 %v892, 64
        %v1227 = vpop.permute.xlu0 %1226
        %1228 = vrot.lane.b32.xlu0 %v893, 64
        %v1229 = vpop.permute.xlu0 %1228
        %1262 = vrot.lane.b32.xlu0 %v894, 96
        %v1263 = vpop.permute.xlu0 %1262
        %1264 = vrot.lane.b32.xlu0 %v895, 96
        %v1265 = vpop.permute.xlu0 %1264
        %1266 = vrot.lane.b32.xlu0 %v896, 96
        %v1267 = vpop.permute.xlu0 %1266
        %1268 = vrot.lane.b32.xlu0 %v897, 96
        %v1269 = vpop.permute.xlu0 %1268
        %1270 = vrot.lane.b32.xlu0 %v898, 96
        %v1271 = vpop.permute.xlu0 %1270
        %1272 = vrot.lane.b32.xlu0 %v899, 96
        %v1273 = vpop.permute.xlu0 %1272
        %1274 = vrot.lane.b32.xlu0 %v900, 96
        %v1275 = vpop.permute.xlu0 %1274
        %1276 = vrot.lane.b32.xlu0 %v901, 96
        %v1277 = vpop.permute.xlu0 %1276
        %1278 = vrot.lane.b32.xlu0 %v902, 96
        %v1279 = vpop.permute.xlu0 %1278
        %1280 = vrot.lane.b32.xlu0 %v903, 96
        %v1281 = vpop.permute.xlu0 %1280
        %1282 = vrot.lane.b32.xlu0 %v904, 96
        %v1283 = vpop.permute.xlu0 %1282
        %1284 = vrot.lane.b32.xlu0 %v905, 96
        %v1285 = vpop.permute.xlu0 %1284
        %1286 = vrot.lane.b32.xlu0 %v906, 96
        %v1287 = vpop.permute.xlu0 %1286
        %1288 = vrot.lane.b32.xlu0 %v907, 96
        %v1289 = vpop.permute.xlu0 %1288
        %1290 = vrot.lane.b32.xlu0 %v908, 96
        %v1291 = vpop.permute.xlu0 %1290
        %1292 = vrot.lane.b32.xlu0 %v909, 96
        %v1293 = vpop.permute.xlu0 %1292
        %v1310 = vsel %vm668, %v781, %v943
        %v1311 = vsel %vm668, %v782, %v945
        %v1312 = vsel %vm668, %v783, %v947
        %v1313 = vsel %vm668, %v784, %v949
        %v1314 = vsel %vm668, %v785, %v951
        %v1315 = vsel %vm668, %v786, %v953
        %v1316 = vsel %vm668, %v787, %v955
        %v1317 = vsel %vm668, %v788, %v957
        %v1318 = vsel %vm668, %v789, %v959
        %v1319 = vsel %vm668, %v790, %v961
        %v1320 = vsel %vm668, %v791, %v963
        %v1321 = vsel %vm668, %v792, %v965
        %v1322 = vsel %vm668, %v793, %v967
        %v1323 = vsel %vm668, %v794, %v969
        %v1324 = vsel %vm668, %v795, %v971
        %v1325 = vsel %vm668, %v796, %v973
        %vm1326 = vcmask 523264
        %v1327 = vsel %vm1326, %v1310, %v1007
        %v1328 = vsel %vm1326, %v1311, %v1009
        %v1329 = vsel %vm1326, %v1312, %v1011
        %v1330 = vsel %vm1326, %v1313, %v1013
        %v1331 = vsel %vm1326, %v1314, %v1015
        %v1332 = vsel %vm1326, %v1315, %v1017
        %v1333 = vsel %vm1326, %v1316, %v1019
        %v1334 = vsel %vm1326, %v1317, %v1021
        %v1335 = vsel %vm1326, %v1318, %v1023
        %v1336 = vsel %vm1326, %v1319, %v1025
        %v1337 = vsel %vm1326, %v1320, %v1027
        %v1338 = vsel %vm1326, %v1321, %v1029
        %v1339 = vsel %vm1326, %v1322, %v1031
        %v1340 = vsel %vm1326, %v1323, %v1033
        %v1341 = vsel %vm1326, %v1324, %v1035
        %v1342 = vsel %vm1326, %v1325, %v1037
        %vm1343 = vcmask 785408
        %v1344 = vsel %vm1343, %v1327, %v1071
        %v1345 = vsel %vm1343, %v1328, %v1073
        %v1346 = vsel %vm1343, %v1329, %v1075
        %v1347 = vsel %vm1343, %v1330, %v1077
        %v1348 = vsel %vm1343, %v1331, %v1079
        %v1349 = vsel %vm1343, %v1332, %v1081
        %v1350 = vsel %vm1343, %v1333, %v1083
        %v1351 = vsel %vm1343, %v1334, %v1085
        %v1352 = vsel %vm1343, %v1335, %v1087
        %v1353 = vsel %vm1343, %v1336, %v1089
        %v1354 = vsel %vm1343, %v1337, %v1091
        %v1355 = vsel %vm1343, %v1338, %v1093
        %v1356 = vsel %vm1343, %v1339, %v1095
        %v1357 = vsel %vm1343, %v1340, %v1097
        %v1358 = vsel %vm1343, %v1341, %v1099
        %v1359 = vsel %vm1343, %v1342, %v1101
        %v1360 = vsel %vm668, %v845, %v1135
        %v1361 = vsel %vm668, %v846, %v1137
        %v1362 = vsel %vm668, %v847, %v1139
        %v1363 = vsel %vm668, %v848, %v1141
        %v1364 = vsel %vm668, %v849, %v1143
        %v1365 = vsel %vm668, %v850, %v1145
        %v1366 = vsel %vm668, %v851, %v1147
        %v1367 = vsel %vm668, %v852, %v1149
        %v1368 = vsel %vm668, %v853, %v1151
        %v1369 = vsel %vm668, %v854, %v1153
        %v1370 = vsel %vm668, %v855, %v1155
        %v1371 = vsel %vm668, %v856, %v1157
        %v1372 = vsel %vm668, %v857, %v1159
        %v1373 = vsel %vm668, %v858, %v1161
        %v1374 = vsel %vm668, %v859, %v1163
        %v1375 = vsel %vm668, %v860, %v1165
        %v1376 = vsel %vm1326, %v1360, %v1199
        %v1377 = vsel %vm1326, %v1361, %v1201
        %v1378 = vsel %vm1326, %v1362, %v1203
        %v1379 = vsel %vm1326, %v1363, %v1205
        %v1380 = vsel %vm1326, %v1364, %v1207
        %v1381 = vsel %vm1326, %v1365, %v1209
        %v1382 = vsel %vm1326, %v1366, %v1211
        %v1383 = vsel %vm1326, %v1367, %v1213
        %v1384 = vsel %vm1326, %v1368, %v1215
        %v1385 = vsel %vm1326, %v1369, %v1217
        %v1386 = vsel %vm1326, %v1370, %v1219
        %v1387 = vsel %vm1326, %v1371, %v1221
        %v1388 = vsel %vm1326, %v1372, %v1223
        %v1389 = vsel %vm1326, %v1373, %v1225
        %v1390 = vsel %vm1326, %v1374, %v1227
        %v1391 = vsel %vm1326, %v1375, %v1229
        %v1392 = vsel %vm1343, %v1376, %v1263
        %v1393 = vsel %vm1343, %v1377, %v1265
        %v1394 = vsel %vm1343, %v1378, %v1267
        %v1395 = vsel %vm1343, %v1379, %v1269
        %v1396 = vsel %vm1343, %v1380, %v1271
        %v1397 = vsel %vm1343, %v1381, %v1273
        %v1398 = vsel %vm1343, %v1382, %v1275
        %v1399 = vsel %vm1343, %v1383, %v1277
        %v1400 = vsel %vm1343, %v1384, %v1279
        %v1401 = vsel %vm1343, %v1385, %v1281
        %v1402 = vsel %vm1343, %v1386, %v1283
        %v1403 = vsel %vm1343, %v1387, %v1285
        %v1404 = vsel %vm1343, %v1388, %v1287
        %v1405 = vsel %vm1343, %v1389, %v1289
        %v1406 = vsel %vm1343, %v1390, %v1291
        %v1407 = vsel %vm1343, %v1391, %v1293
        %v1409 = vsel %vm668, %v910, 0
        %v1412 = vsel %vm668, %v911, 0
        %v1415 = vsel %vm668, %v912, 0
        %v1418 = vsel %vm668, %v913, 0
        %v1421 = vsel %vm668, %v914, 0
        %v1424 = vsel %vm668, %v915, 0
        %v1427 = vsel %vm668, %v916, 0
        %v1430 = vsel %vm668, %v917, 0
        %v1433 = vsel %vm668, %v918, 0
        %v1436 = vsel %vm668, %v919, 0
        %v1439 = vsel %vm668, %v920, 0
        %v1442 = vsel %vm668, %v921, 0
        %v1445 = vsel %vm668, %v922, 0
        %v1448 = vsel %vm668, %v923, 0
        %v1451 = vsel %vm668, %v924, 0
        %v1454 = vsel %vm668, %v925, 0
        %1456 = vmatpush.msra.mxu0 %v480
        %1457 = vmatpush.msra.mxu0 %v479
        %1458 = vmatpush.msra.mxu0 %v478
        %1459 = vmatpush.msra.mxu0 %v477
        %1460 = vmatpush.msra.mxu0 %v476
        %1461 = vmatpush.msra.mxu0 %v475
        %1462 = vmatpush.msra.mxu0 %v474
        %1463 = vmatpush.msra.mxu0 %v473
        %1464 = vmatpush.msra.mxu0 %v472
        %1465 = vmatpush.msra.mxu0 %v471
        %1466 = vmatpush.msra.mxu0 %v470
        %1467 = vmatpush.msra.mxu0 %v469
        %1468 = vmatpush.msra.mxu0 %v468
        %1469 = vmatpush.msra.mxu0 %v467
        %1470 = vmatpush.msra.mxu0 %v466
        %1471 = vmatpush.msra.mxu0 %v465
        %1472 = vmatmul.f32.gmra.mxu0 %v1344
        %v1473 = vpop.f32.mrf.mxu0
        %v1474 = vadd.f32 0.0, %v1473
        %1475 = vmatmul.f32.gmra.mxu0 %v1345
        %v1476 = vpop.f32.mrf.mxu0
        %v1477 = vadd.f32 0.0, %v1476
        %1478 = vmatmul.f32.gmra.mxu0 %v1346
        %v1479 = vpop.f32.mrf.mxu0
        %v1480 = vadd.f32 0.0, %v1479
        %1481 = vmatmul.f32.gmra.mxu0 %v1347
        %v1482 = vpop.f32.mrf.mxu0
        %v1483 = vadd.f32 0.0, %v1482
        %1484 = vmatmul.f32.gmra.mxu0 %v1348
        %v1485 = vpop.f32.mrf.mxu0
        %v1486 = vadd.f32 0.0, %v1485
        %1487 = vmatmul.f32.gmra.mxu0 %v1349
        %v1488 = vpop.f32.mrf.mxu0
        %v1489 = vadd.f32 0.0, %v1488
        %1490 = vmatmul.f32.gmra.mxu0 %v1350
        %v1491 = vpop.f32.mrf.mxu0
        %v1492 = vadd.f32 0.0, %v1491
        %1493 = vmatmul.f32.gmra.mxu0 %v1351
        %v1494 = vpop.f32.mrf.mxu0
        %v1495 = vadd.f32 0.0, %v1494
        %1496 = vmatmul.f32.gmra.mxu0 %v1352
        %v1497 = vpop.f32.mrf.mxu0
        %v1498 = vadd.f32 0.0, %v1497
        %1499 = vmatmul.f32.gmra.mxu0 %v1353
        %v1500 = vpop.f32.mrf.mxu0
        %v1501 = vadd.f32 0.0, %v1500
        %1502 = vmatmul.f32.gmra.mxu0 %v1354
        %v1503 = vpop.f32.mrf.mxu0
        %v1504 = vadd.f32 0.0, %v1503
        %1505 = vmatmul.f32.gmra.mxu0 %v1355
        %v1506 = vpop.f32.mrf.mxu0
        %v1507 = vadd.f32 0.0, %v1506
        %1508 = vmatmul.f32.gmra.mxu0 %v1356
        %v1509 = vpop.f32.mrf.mxu0
        %v1510 = vadd.f32 0.0, %v1509
        %1511 = vmatmul.f32.gmra.mxu0 %v1357
        %v1512 = vpop.f32.mrf.mxu0
        %v1513 = vadd.f32 0.0, %v1512
        %1514 = vmatmul.f32.gmra.mxu0 %v1358
        %v1515 = vpop.f32.mrf.mxu0
        %v1516 = vadd.f32 0.0, %v1515
        %1517 = vmatmul.f32.gmra.mxu0 %v1359
        %v1518 = vpop.f32.mrf.mxu0
        %v1519 = vadd.f32 0.0, %v1518
        %1520 = vdwg.mxu0
        %1521 = vmatpush.msra.mxu0 %v496
        %1522 = vmatpush.msra.mxu0 %v495
        %1523 = vmatpush.msra.mxu0 %v494
        %1524 = vmatpush.msra.mxu0 %v493
        %1525 = vmatpush.msra.mxu0 %v492
        %1526 = vmatpush.msra.mxu0 %v491
        %1527 = vmatpush.msra.mxu0 %v490
        %1528 = vmatpush.msra.mxu0 %v489
        %1529 = vmatpush.msra.mxu0 %v488
        %1530 = vmatpush.msra.mxu0 %v487
        %1531 = vmatpush.msra.mxu0 %v486
        %1532 = vmatpush.msra.mxu0 %v485
        %1533 = vmatpush.msra.mxu0 %v484
        %1534 = vmatpush.msra.mxu0 %v483
        %1535 = vmatpush.msra.mxu0 %v482
        %1536 = vmatpush.msra.mxu0 %v481
        %1537 = vmatmul.f32.gmra.mxu0 %v1392
        %v1538 = vpop.f32.mrf.mxu0
        %v1539 = vadd.f32 %v1474, %v1538
        %1540 = vmatmul.f32.gmra.mxu0 %v1393
        %v1541 = vpop.f32.mrf.mxu0
        %v1542 = vadd.f32 %v1477, %v1541
        %1543 = vmatmul.f32.gmra.mxu0 %v1394
        %v1544 = vpop.f32.mrf.mxu0
        %v1545 = vadd.f32 %v1480, %v1544
        %1546 = vmatmul.f32.gmra.mxu0 %v1395
        %v1547 = vpop.f32.mrf.mxu0
        %v1548 = vadd.f32 %v1483, %v1547
        %1549 = vmatmul.f32.gmra.mxu0 %v1396
        %v1550 = vpop.f32.mrf.mxu0
        %v1551 = vadd.f32 %v1486, %v1550
        %1552 = vmatmul.f32.gmra.mxu0 %v1397
        %v1553 = vpop.f32.mrf.mxu0
        %v1554 = vadd.f32 %v1489, %v1553
        %1555 = vmatmul.f32.gmra.mxu0 %v1398
        %v1556 = vpop.f32.mrf.mxu0
        %v1557 = vadd.f32 %v1492, %v1556
        %1558 = vmatmul.f32.gmra.mxu0 %v1399
        %v1559 = vpop.f32.mrf.mxu0
        %v1560 = vadd.f32 %v1495, %v1559
        %1561 = vmatmul.f32.gmra.mxu0 %v1400
        %v1562 = vpop.f32.mrf.mxu0
        %v1563 = vadd.f32 %v1498, %v1562
        %1564 = vmatmul.f32.gmra.mxu0 %v1401
        %v1565 = vpop.f32.mrf.mxu0
        %v1566 = vadd.f32 %v1501, %v1565
        %1567 = vmatmul.f32.gmra.mxu0 %v1402
        %v1568 = vpop.f32.mrf.mxu0
        %v1569 = vadd.f32 %v1504, %v1568
        %1570 = vmatmul.f32.gmra.mxu0 %v1403
        %v1571 = vpop.f32.mrf.mxu0
        %v1572 = vadd.f32 %v1507, %v1571
        %1573 = vmatmul.f32.gmra.mxu0 %v1404
        %v1574 = vpop.f32.mrf.mxu0
        %v1575 = vadd.f32 %v1510, %v1574
        %1576 = vmatmul.f32.gmra.mxu0 %v1405
        %v1577 = vpop.f32.mrf.mxu0
        %v1578 = vadd.f32 %v1513, %v1577
        %1579 = vmatmul.f32.gmra.mxu0 %v1406
        %v1580 = vpop.f32.mrf.mxu0
        %v1581 = vadd.f32 %v1516, %v1580
        %1582 = vmatmul.f32.gmra.mxu0 %v1407
        %v1583 = vpop.f32.mrf.mxu0
        %v1584 = vadd.f32 %v1519, %v1583
        %1585 = vdwg.mxu0
        %1586 = vmatpush.msra.mxu0 0.0
        %1587 = vmatpush.msra.mxu0 0.0
        %1588 = vmatpush.msra.mxu0 0.0
        %1589 = vmatpush.msra.mxu0 0.0
        %1590 = vmatpush.msra.mxu0 0.0
        %1591 = vmatpush.msra.mxu0 0.0
        %1592 = vmatpush.msra.mxu0 0.0
        %1593 = vmatpush.msra.mxu0 0.0
        %1594 = vmatpush.msra.mxu0 0.0
        %1595 = vmatpush.msra.mxu0 0.0
        %1596 = vmatpush.msra.mxu0 0.0
        %1597 = vmatpush.msra.mxu0 0.0
        %1598 = vmatpush.msra.mxu0 %v500
        %1599 = vmatpush.msra.mxu0 %v499
        %1600 = vmatpush.msra.mxu0 %v498
        %1601 = vmatpush.msra.mxu0 %v497
        %1602 = vmatmul.f32.gmra.mxu0 %v1409
        %v1603 = vpop.f32.mrf.mxu0
        %v1604 = vadd.f32 %v1539, %v1603
        %1605 = vmatmul.f32.gmra.mxu0 %v1412
        %v1606 = vpop.f32.mrf.mxu0
        %v1607 = vadd.f32 %v1542, %v1606
        %1608 = vmatmul.f32.gmra.mxu0 %v1415
        %v1609 = vpop.f32.mrf.mxu0
        %v1610 = vadd.f32 %v1545, %v1609
        %1611 = vmatmul.f32.gmra.mxu0 %v1418
        %v1612 = vpop.f32.mrf.mxu0
        %v1613 = vadd.f32 %v1548, %v1612
        %1614 = vmatmul.f32.gmra.mxu0 %v1421
        %v1615 = vpop.f32.mrf.mxu0
        %v1616 = vadd.f32 %v1551, %v1615
        %1617 = vmatmul.f32.gmra.mxu0 %v1424
        %v1618 = vpop.f32.mrf.mxu0
        %v1619 = vadd.f32 %v1554, %v1618
        %1620 = vmatmul.f32.gmra.mxu0 %v1427
        %v1621 = vpop.f32.mrf.mxu0
        %v1622 = vadd.f32 %v1557, %v1621
        %1623 = vmatmul.f32.gmra.mxu0 %v1430
        %v1624 = vpop.f32.mrf.mxu0
        %v1625 = vadd.f32 %v1560, %v1624
        %1626 = vmatmul.f32.gmra.mxu0 %v1433
        %v1627 = vpop.f32.mrf.mxu0
        %v1628 = vadd.f32 %v1563, %v1627
        %1629 = vmatmul.f32.gmra.mxu0 %v1436
        %v1630 = vpop.f32.mrf.mxu0
        %v1631 = vadd.f32 %v1566, %v1630
        %1632 = vmatmul.f32.gmra.mxu0 %v1439
        %v1633 = vpop.f32.mrf.mxu0
        %v1634 = vadd.f32 %v1569, %v1633
        %1635 = vmatmul.f32.gmra.mxu0 %v1442
        %v1636 = vpop.f32.mrf.mxu0
        %v1637 = vadd.f32 %v1572, %v1636
        %1638 = vmatmul.f32.gmra.mxu0 %v1445
        %v1639 = vpop.f32.mrf.mxu0
        %v1640 = vadd.f32 %v1575, %v1639
        %1641 = vmatmul.f32.gmra.mxu0 %v1448
        %v1642 = vpop.f32.mrf.mxu0
        %v1643 = vadd.f32 %v1578, %v1642
        %1644 = vmatmul.f32.gmra.mxu0 %v1451
        %v1645 = vpop.f32.mrf.mxu0
        %v1646 = vadd.f32 %v1581, %v1645
        %1647 = vmatmul.f32.gmra.mxu0 %v1454
        %v1648 = vpop.f32.mrf.mxu0
        %v1649 = vadd.f32 %v1584, %v1648
        %1650 = vdwg.mxu0
        %v1652 = vperm.slane %v507, 0
        %v1654 = vmul.f32 %v1604, %v1652
        %v1655 = vmul.f32 %v1607, %v1652
        %v1656 = vmul.f32 %v1610, %v1652
        %v1657 = vmul.f32 %v1613, %v1652
        %v1658 = vmul.f32 %v1616, %v1652
        %v1659 = vmul.f32 %v1619, %v1652
        %v1660 = vmul.f32 %v1622, %v1652
        %v1661 = vmul.f32 %v1625, %v1652
        %v1662 = vmul.f32 %v1628, %v1652
        %v1663 = vmul.f32 %v1631, %v1652
        %v1664 = vmul.f32 %v1634, %v1652
        %v1665 = vmul.f32 %v1637, %v1652
        %v1666 = vmul.f32 %v1640, %v1652
        %v1667 = vmul.f32 %v1643, %v1652
        %v1668 = vmul.f32 %v1646, %v1652
        %v1669 = vmul.f32 %v1649, %v1652
        %v1671 = vperm.slane %v508, 0
        %v1673 = vadd.f32 %v1654, %v1671
        %v1674 = vadd.f32 %v1655, %v1671
        %v1675 = vadd.f32 %v1656, %v1671
        %v1676 = vadd.f32 %v1657, %v1671
        %v1677 = vadd.f32 %v1658, %v1671
        %v1678 = vadd.f32 %v1659, %v1671
        %v1679 = vadd.f32 %v1660, %v1671
        %v1680 = vadd.f32 %v1661, %v1671
        %v1681 = vadd.f32 %v1662, %v1671
        %v1682 = vadd.f32 %v1663, %v1671
        %v1683 = vadd.f32 %v1664, %v1671
        %v1684 = vadd.f32 %v1665, %v1671
        %v1685 = vadd.f32 %v1666, %v1671
        %v1686 = vadd.f32 %v1667, %v1671
        %v1687 = vadd.f32 %v1668, %v1671
        %v1688 = vadd.f32 %v1669, %v1671
        %v1689 = vmax.f32 %v1673, 0.0
        %v1690 = vmax.f32 %v1674, 0.0
        %v1691 = vmax.f32 %v1675, 0.0
        %v1692 = vmax.f32 %v1676, 0.0
        %v1693 = vmax.f32 %v1677, 0.0
        %v1694 = vmax.f32 %v1678, 0.0
        %v1695 = vmax.f32 %v1679, 0.0
        %v1696 = vmax.f32 %v1680, 0.0
        %v1697 = vmax.f32 %v1681, 0.0
        %v1698 = vmax.f32 %v1682, 0.0
        %v1699 = vmax.f32 %v1683, 0.0
        %v1700 = vmax.f32 %v1684, 0.0
        %v1701 = vmax.f32 %v1685, 0.0
        %v1702 = vmax.f32 %v1686, 0.0
        %v1703 = vmax.f32 %v1687, 0.0
        %v1704 = vmax.f32 %v1688, 0.0
        %v1706 = vsel %vm668, %v1689, 0
        %v1709 = vsel %vm668, %v1690, 0
        %v1712 = vsel %vm668, %v1691, 0
        %v1715 = vsel %vm668, %v1692, 0
        %v1718 = vsel %vm668, %v1693, 0
        %v1721 = vsel %vm668, %v1694, 0
        %v1724 = vsel %vm668, %v1695, 0
        %v1727 = vsel %vm668, %v1696, 0
        %v1730 = vsel %vm668, %v1697, 0
        %v1733 = vsel %vm668, %v1698, 0
        %v1736 = vsel %vm668, %v1699, 0
        %v1739 = vsel %vm668, %v1700, 0
        %v1742 = vsel %vm668, %v1701, 0
        %v1745 = vsel %vm668, %v1702, 0
        %v1748 = vsel %vm668, %v1703, 0
        %v1751 = vsel %vm668, %v1704, 0
        %1753 = vmatpush.msra.mxu0 0.0
        %1754 = vmatpush.msra.mxu0 0.0
        %1755 = vmatpush.msra.mxu0 0.0
        %1756 = vmatpush.msra.mxu0 0.0
        %1757 = vmatpush.msra.mxu0 0.0
        %1758 = vmatpush.msra.mxu0 0.0
        %1759 = vmatpush.msra.mxu0 0.0
        %1760 = vmatpush.msra.mxu0 0.0
        %1761 = vmatpush.msra.mxu0 0.0
        %1762 = vmatpush.msra.mxu0 0.0
        %1763 = vmatpush.msra.mxu0 0.0
        %1764 = vmatpush.msra.mxu0 0.0
        %1765 = vmatpush.msra.mxu0 %v504
        %1766 = vmatpush.msra.mxu0 %v503
        %1767 = vmatpush.msra.mxu0 %v502
        %1768 = vmatpush.msra.mxu0 %v501
        %1769 = vmatmul.f32.gmra.mxu0 %v1706
        %v1770 = vpop.f32.mrf.mxu0
        %v1771 = vadd.f32 0.0, %v1770
        %1772 = vmatmul.f32.gmra.mxu0 %v1709
        %v1773 = vpop.f32.mrf.mxu0
        %v1774 = vadd.f32 0.0, %v1773
        %1775 = vmatmul.f32.gmra.mxu0 %v1712
        %v1776 = vpop.f32.mrf.mxu0
        %v1777 = vadd.f32 0.0, %v1776
        %1778 = vmatmul.f32.gmra.mxu0 %v1715
        %v1779 = vpop.f32.mrf.mxu0
        %v1780 = vadd.f32 0.0, %v1779
        %1781 = vmatmul.f32.gmra.mxu0 %v1718
        %v1782 = vpop.f32.mrf.mxu0
        %v1783 = vadd.f32 0.0, %v1782
        %1784 = vmatmul.f32.gmra.mxu0 %v1721
        %v1785 = vpop.f32.mrf.mxu0
        %v1786 = vadd.f32 0.0, %v1785
        %1787 = vmatmul.f32.gmra.mxu0 %v1724
        %v1788 = vpop.f32.mrf.mxu0
        %v1789 = vadd.f32 0.0, %v1788
        %1790 = vmatmul.f32.gmra.mxu0 %v1727
        %v1791 = vpop.f32.mrf.mxu0
        %v1792 = vadd.f32 0.0, %v1791
        %1793 = vmatmul.f32.gmra.mxu0 %v1730
        %v1794 = vpop.f32.mrf.mxu0
        %v1795 = vadd.f32 0.0, %v1794
        %1796 = vmatmul.f32.gmra.mxu0 %v1733
        %v1797 = vpop.f32.mrf.mxu0
        %v1798 = vadd.f32 0.0, %v1797
        %1799 = vmatmul.f32.gmra.mxu0 %v1736
        %v1800 = vpop.f32.mrf.mxu0
        %v1801 = vadd.f32 0.0, %v1800
        %1802 = vmatmul.f32.gmra.mxu0 %v1739
        %v1803 = vpop.f32.mrf.mxu0
        %v1804 = vadd.f32 0.0, %v1803
        %1805 = vmatmul.f32.gmra.mxu0 %v1742
        %v1806 = vpop.f32.mrf.mxu0
        %v1807 = vadd.f32 0.0, %v1806
        %1808 = vmatmul.f32.gmra.mxu0 %v1745
        %v1809 = vpop.f32.mrf.mxu0
        %v1810 = vadd.f32 0.0, %v1809
        %1811 = vmatmul.f32.gmra.mxu0 %v1748
        %v1812 = vpop.f32.mrf.mxu0
        %v1813 = vadd.f32 0.0, %v1812
        %1814 = vmatmul.f32.gmra.mxu0 %v1751
        %v1815 = vpop.f32.mrf.mxu0
        %v1816 = vadd.f32 0.0, %v1815
        %1817 = vdwg.mxu0
        %v1818 = vld [vmem:[%s362] sm:$0xff]
        %v1819 = vld [vmem:[%s362 + $0x8] sm:$0xff]
        %v1820 = vld [vmem:[%s362 + $0x10] sm:$0xff]
        %v1821 = vld [vmem:[%s362 + $0x18] sm:$0xff]
        %v1822 = vld [vmem:[%s362 + $0x20] sm:$0xff]
        %v1823 = vld [vmem:[%s362 + $0x28] sm:$0xff]
        %v1824 = vld [vmem:[%s362 + $0x30] sm:$0xff]
        %v1825 = vld [vmem:[%s362 + $0x38] sm:$0xff]
        %v1826 = vld [vmem:[%s362 + $0x40] sm:$0xff]
        %v1827 = vld [vmem:[%s362 + $0x48] sm:$0xff]
        %v1828 = vld [vmem:[%s362 + $0x50] sm:$0xff]
        %v1829 = vld [vmem:[%s362 + $0x58] sm:$0xff]
        %v1830 = vld [vmem:[%s362 + $0x60] sm:$0xff]
        %v1831 = vld [vmem:[%s362 + $0x68] sm:$0xff]
        %v1832 = vld [vmem:[%s362 + $0x70] sm:$0xff]
        %v1833 = vld [vmem:[%s362 + $0x78] sm:$0xff]
        %v1835 = vperm.slane %v509, 0
        %v1837 = vmul.f32 %v1771, %v1835
        %v1838 = vmul.f32 %v1774, %v1835
        %v1839 = vmul.f32 %v1777, %v1835
        %v1840 = vmul.f32 %v1780, %v1835
        %v1841 = vmul.f32 %v1783, %v1835
        %v1842 = vmul.f32 %v1786, %v1835
        %v1843 = vmul.f32 %v1789, %v1835
        %v1844 = vmul.f32 %v1792, %v1835
        %v1845 = vmul.f32 %v1795, %v1835
        %v1846 = vmul.f32 %v1798, %v1835
        %v1847 = vmul.f32 %v1801, %v1835
        %v1848 = vmul.f32 %v1804, %v1835
        %v1849 = vmul.f32 %v1807, %v1835
        %v1850 = vmul.f32 %v1810, %v1835
        %v1851 = vmul.f32 %v1813, %v1835
        %v1852 = vmul.f32 %v1816, %v1835
        %v1854 = vperm.slane %v510, 0
        %v1856 = vadd.f32 %v1837, %v1854
        %v1857 = vadd.f32 %v1838, %v1854
        %v1858 = vadd.f32 %v1839, %v1854
        %v1859 = vadd.f32 %v1840, %v1854
        %v1860 = vadd.f32 %v1841, %v1854
        %v1861 = vadd.f32 %v1842, %v1854
        %v1862 = vadd.f32 %v1843, %v1854
        %v1863 = vadd.f32 %v1844, %v1854
        %v1864 = vadd.f32 %v1845, %v1854
        %v1865 = vadd.f32 %v1846, %v1854
        %v1866 = vadd.f32 %v1847, %v1854
        %v1867 = vadd.f32 %v1848, %v1854
        %v1868 = vadd.f32 %v1849, %v1854
        %v1869 = vadd.f32 %v1850, %v1854
        %v1870 = vadd.f32 %v1851, %v1854
        %v1871 = vadd.f32 %v1852, %v1854
        %v1872 = vadd.f32 %v1856, %v1818
        %v1873 = vadd.f32 %v1857, %v1819
        %v1874 = vadd.f32 %v1858, %v1820
        %v1875 = vadd.f32 %v1859, %v1821
        %v1876 = vadd.f32 %v1860, %v1822
        %v1877 = vadd.f32 %v1861, %v1823
        %v1878 = vadd.f32 %v1862, %v1824
        %v1879 = vadd.f32 %v1863, %v1825
        %v1880 = vadd.f32 %v1864, %v1826
        %v1881 = vadd.f32 %v1865, %v1827
        %v1882 = vadd.f32 %v1866, %v1828
        %v1883 = vadd.f32 %v1867, %v1829
        %v1884 = vadd.f32 %v1868, %v1830
        %v1885 = vadd.f32 %v1869, %v1831
        %v1886 = vadd.f32 %v1870, %v1832
        %v1887 = vadd.f32 %v1871, %v1833
        %v1888 = vmax.f32 %v1872, 0.0
        %v1889 = vmax.f32 %v1873, 0.0
        %v1890 = vmax.f32 %v1874, 0.0
        %v1891 = vmax.f32 %v1875, 0.0
        %v1892 = vmax.f32 %v1876, 0.0
        %v1893 = vmax.f32 %v1877, 0.0
        %v1894 = vmax.f32 %v1878, 0.0
        %v1895 = vmax.f32 %v1879, 0.0
        %v1896 = vmax.f32 %v1880, 0.0
        %v1897 = vmax.f32 %v1881, 0.0
        %v1898 = vmax.f32 %v1882, 0.0
        %v1899 = vmax.f32 %v1883, 0.0
        %v1900 = vmax.f32 %v1884, 0.0
        %v1901 = vmax.f32 %v1885, 0.0
        %v1902 = vmax.f32 %v1886, 0.0
        %v1903 = vmax.f32 %v1887, 0.0
        %1904 = vst [vmem:[%s399] sm:$0xff] %v1888
        %1905 = vst [vmem:[%s399 + $0x8] sm:$0xff] %v1889
        %1906 = vst [vmem:[%s399 + $0x10] sm:$0xff] %v1890
        %1907 = vst [vmem:[%s399 + $0x18] sm:$0xff] %v1891
        %1908 = vst [vmem:[%s399 + $0x20] sm:$0xff] %v1892
        %1909 = vst [vmem:[%s399 + $0x28] sm:$0xff] %v1893
        %1910 = vst [vmem:[%s399 + $0x30] sm:$0xff] %v1894
        %1911 = vst [vmem:[%s399 + $0x38] sm:$0xff] %v1895
        %1912 = vst [vmem:[%s399 + $0x40] sm:$0xff] %v1896
        %1913 = vst [vmem:[%s399 + $0x48] sm:$0xff] %v1897
        %1914 = vst [vmem:[%s399 + $0x50] sm:$0xff] %v1898
        %1915 = vst [vmem:[%s399 + $0x58] sm:$0xff] %v1899
        %1916 = vst [vmem:[%s399 + $0x60] sm:$0xff] %v1900
        %1917 = vst [vmem:[%s399 + $0x68] sm:$0xff] %v1901
        %1918 = vst [vmem:[%s399 + $0x70] sm:$0xff] %v1902
        %1919 = vst [vmem:[%s399 + $0x78] sm:$0xff] %v1903
        %s1920 = sand.u32 %s267, 1
        %s1921 = scalar_lea.sflag [#allocation7], %s1920
        %s1922 = sand.u32 %s267, 1
        %s1923 = smul.addr %s1922, 128
        %s1924 = scalar_lea.vmem [#allocation8], %s1923
        // Predicated region
        $region97: #{tpu_custom_call.1} parent=59 // pred_check
          %p1925 = pneg %p277
        $region98: #{tpu_custom_call.1} parent=59 // pred_check_branch
          %1927 = sbr.rel (%p1925) target = $region100
        $region99: #{tpu_custom_call.1} parent=59 // pred_region
          %s1928 = smul.u32 8, %s33
          %1930 = vsyncadd %s1921, 0
          %s1931 = smul.addr %s1928, 2
          %s1932 = smul.addr %s32, 48
          %s1933 = sadd.s32 %s1931, %s1932
          %s1934 = smul.addr %s1933, 8
          %s1935 = scalar_lea.hbm %s11, %s1934
          %s1936 = sshll.u32 %s1924, 4
          %s1937 = int_to_ptr.vmem [resolvable:$true] %s1936
          %s1938 = sshll.u32 %s1935, 4
          %s1939 = int_to_ptr.hbm [resolvable:$true] %s1938
          %1944 = dma.vmem_to_hbm [thread:$0]  %s1937, 2048, %s1939, %s1921, 128, 128, 8
        $region100: #{tpu_custom_call.1} parent=59 // pred_fallthru
          _
      $region60: #{tpu_custom_call.1} parent=5 // pred_fallthru
        _
      %p1945 = scmp.le.s32.totalorder 2, %s23
      // Predicated region
      $region101: #{tpu_custom_call.1} parent=5 // pred_check
        %p1946 = pneg %p1945
      $region102: #{tpu_custom_call.1} parent=5 // pred_check_branch
        %1948 = sbr.rel (%p1946) target = $region104
      $region103: #{tpu_custom_call.1} parent=5 // pred_region
        %s1949 = ssub.s32 %s23, 2
        // Predicated region
        $region105: #{tpu_custom_call.1} parent=103 // pred_check
          %p1950 = pneg %p283
        $region106: #{tpu_custom_call.1} parent=103 // pred_check_branch
          %1952 = sbr.rel (%p1950) target = $region108
        $region107: #{tpu_custom_call.1} parent=103 // pred_region
          %s1953 = sand.u32 %s268, 1
          %s1954 = scalar_lea.sflag [#allocation7], %s1953
          %s1955 = sand.u32 %s268, 1
          %s1956 = smul.addr %s1955, 128
          %s1957 = scalar_lea.vmem [#allocation8], %s1956
          %1959 = dma.done %s1954, 2048
        $region108: #{tpu_custom_call.1} parent=103 // pred_fallthru
          _
      $region104: #{tpu_custom_call.1} parent=5 // pred_fallthru
        _
    $region6: #{tpu_custom_call.1} parent=1 // loop_footer
      %s27 = sadd.s32 1, %s23
    $region7: #{tpu_custom_call.1} parent=1 // loop_footer_branch
      %22 = sbr.rel target = $region3
    $region8: #{tpu_custom_call.1} parent=1 // loop_exit
      _
    %1960 = vsyncpa [#allocation6], 1
    %s1961 = scalar_lea.sflag [#allocation6], 1
    %1962 = vsyncpa %s1961, 1
    %1963 = vsyncpa [#allocation7], 1
    %s1964 = scalar_lea.sflag [#allocation7], 1
    %1965 = vsyncpa %s1964, 1
  %1966 = vsyncmov [#allocation4]
  %s1967 = vpop.sfrf %1966
  %p1968 = scmp.eq.s32.totalorder %s1967, 0
  %p1969 = pneg %p1968
  %1971 = shalt.err (%p1969)
  %s1972 = scalar_lea.sflag [#allocation4], 1
  %1973 = vsyncmov %s1972
  %s1974 = vpop.sfrf %1973
  %p1975 = scmp.eq.s32.totalorder %s1974, 0
  %p1976 = pneg %p1975
  %1978 = shalt.err (%p1976)

</llo_original>
